<compile_context>
chip_gen: v6e
topology: v6e:2x2x1
jax: 0.10.0
libtpu: 0.0.40
codegen_flags: <defaults>
</compile_context>

<pallas_src>
import math

import numpy as np
import jax
import jax.numpy as jnp
from jax import lax
from jax.experimental import pallas as pl
from jax.experimental.pallas import tpu as pltpu


# ----------------------------- config (small) ------------------------------
HIDDEN_SIZE = 32
NUM_HEADS = 4
NUM_KV_HEADS = 2
HEAD_DIM = HIDDEN_SIZE // NUM_HEADS          # 8
NUM_KV_GROUPS = NUM_HEADS // NUM_KV_HEADS    # 2
ROPE_THETA = 10000.0
BATCH = 2
SEQ = 8

Q_WIDTH = NUM_HEADS * HEAD_DIM               # 32
KV_WIDTH = NUM_KV_HEADS * HEAD_DIM           # 16
QKV_WIDTH = Q_WIDTH + 2 * KV_WIDTH           # 64


# ------------------------------ fused kernel -------------------------------
def _fused_attn_kernel(x_ref, wbig_ref, tab_ref, woh_ref, o_ref):
    # One grid step == one batch element (SEQ tokens).
    # x_ref:    [SEQ, HIDDEN]                 this batch's activations
    # wbig_ref: [2*QKV_WIDTH, HIDDEN]         concat([Wqkv, R^T @ Wqkv], 0)  (PyTorch [out,in])
    # tab_ref:  [SEQ, 2*QKV_WIDTH]            packed [cos | sin]; 1/sqrt(D) folded into q cols
    # woh_ref:  [NUM_HEADS, HEAD_DIM, HIDDEN] per-head slices of Wo^T
    # o_ref:    [SEQ, HIDDEN]
    dn = (((1,), (1,)), ((), ()))   # contract last dims: x @ W^T without transposing W

    # Fused QKV projection + rotate-half companion in one lane-dense MXU matmul.
    big = lax.dot_general(x_ref[...], wbig_ref[...], dn,
                          preferred_element_type=jnp.float32)          # [S, 128]

    # RoPE (+ q scaling): one elementwise mul with the packed table, then fold halves.
    rot = big * tab_ref[...]                                           # [S, 128]
    qkv = rot[:, :QKV_WIDTH] + rot[:, QKV_WIDTH:]                      # [S, 64]

    q = qkv[:, :Q_WIDTH]                                               # [S, 32] (pre-scaled)
    k = qkv[:, Q_WIDTH:Q_WIDTH + KV_WIDTH]                             # [S, 16]
    v = qkv[:, Q_WIDTH + KV_WIDTH:]                                    # [S, 16]

    # Causal mask (hoisted once).
    row = lax.broadcasted_iota(jnp.int32, (SEQ, SEQ), 0)
    col = lax.broadcasted_iota(jnp.int32, (SEQ, SEQ), 1)
    causal = col <= row

    acc = None
    for h in range(NUM_HEADS):                 # 4 static iterations, wo folded per head
        kvh = h // NUM_KV_GROUPS               # GQA sharing
        q_h = q[:, h * HEAD_DIM:(h + 1) * HEAD_DIM]
        k_h = k[:, kvh * HEAD_DIM:(kvh + 1) * HEAD_DIM]
        v_h = v[:, kvh * HEAD_DIM:(kvh + 1) * HEAD_DIM]

        # scores: contract last dims of q and k (no k.T materialization)
        s = lax.dot_general(q_h, k_h, dn, preferred_element_type=jnp.float32)  # [S, S]
        s = jnp.where(causal, s, -1e30)
        m = jnp.max(s, axis=-1, keepdims=True)
        p = jnp.exp(s - m)
        # EUP reciprocal instead of VALU divide.
        p = p * pl.reciprocal(jnp.sum(p, axis=-1, keepdims=True), approx=True)

        o_h = jnp.dot(p, v_h, preferred_element_type=jnp.float32)       # [S, D]
        contrib = jnp.dot(o_h, woh_ref[h],
                          preferred_element_type=jnp.float32)           # [S, HIDDEN]
        acc = contrib if acc is None else acc + contrib

    o_ref[...] = acc


@jax.jit
def parallel_llama_attention(x2d, w_big, tab, wo_heads):
    out = pl.pallas_call(
        _fused_attn_kernel,
        out_shape=jax.ShapeDtypeStruct((BATCH * SEQ, HIDDEN_SIZE), jnp.float32),
        grid_spec=pltpu.PrefetchScalarGridSpec(
            num_scalar_prefetch=0,
            grid=(BATCH,),
            in_specs=[
                pl.BlockSpec((SEQ, HIDDEN_SIZE), lambda b: (b, 0)),
                pl.BlockSpec((2 * QKV_WIDTH, HIDDEN_SIZE), lambda b: (0, 0)),
                pl.BlockSpec((SEQ, 2 * QKV_WIDTH), lambda b: (0, 0)),
                pl.BlockSpec((NUM_HEADS, HEAD_DIM, HIDDEN_SIZE), lambda b: (0, 0, 0)),
            ],
            out_specs=pl.BlockSpec((SEQ, HIDDEN_SIZE), lambda b: (b, 0)),
        ),
        compiler_params=pltpu.CompilerParams(dimension_semantics=("parallel",)),
    )(x2d, w_big, tab, wo_heads)
    return out.reshape(BATCH, SEQ, HIDDEN_SIZE)


# ----------------------- host-side constant precompute ----------------------
def rotary_tables(seq_len, head_dim, theta):
    inv_freq = 1.0 / (theta ** (jnp.arange(0, head_dim, 2, dtype=jnp.float32) / head_dim))
    pos = jnp.arange(seq_len, dtype=jnp.float32)
    freqs = pos[:, None] * inv_freq[None, :]                 # [S, D/2]
    emb = jnp.concatenate([freqs, freqs], axis=-1)           # [S, D]
    return jnp.cos(emb), jnp.sin(emb)


def precompute_constants(wq, wk, wv, wo):
    """Fused QKV(+rotate) weight, packed sign/scale-folded table, per-head Wo^T."""
    # rotate_half as a right-multiplication matrix per head: y = x @ rh
    half = HEAD_DIM // 2
    rh = np.zeros((HEAD_DIM, HEAD_DIM), dtype=np.float32)
    for j in range(half):
        rh[j + half, j] = -1.0        # y[j]      = -x[j+half]
        rh[j, j + half] = 1.0         # y[j+half] =  x[j]
    # block-diag over q and k heads; v heads stay zero (their sin is zero anyway)
    R = np.zeros((QKV_WIDTH, QKV_WIDTH), dtype=np.float32)
    for h in range(NUM_HEADS + NUM_KV_HEADS):
        o = h * HEAD_DIM
        R[o:o + HEAD_DIM, o:o + HEAD_DIM] = rh
    R = jnp.asarray(R)

    wqkv = jnp.concatenate([wq, wk, wv], axis=0)             # [QKV_WIDTH, H]
    w_rot = R.T @ wqkv                                       # rotate_half folded into weights
    w_big = jnp.concatenate([wqkv, w_rot], axis=0)           # [2*QKV_WIDTH, H] = [128, 32]

    cos, sin = rotary_tables(SEQ, HEAD_DIM, ROPE_THETA)      # [S, D]
    scale = 1.0 / math.sqrt(HEAD_DIM)
    cos_row = jnp.concatenate([
        jnp.tile(cos, (1, NUM_HEADS)) * scale,               # q cols: RoPE * 1/sqrt(D)
        jnp.tile(cos, (1, NUM_KV_HEADS)),                    # k cols: RoPE
        jnp.ones((SEQ, KV_WIDTH), jnp.float32)], axis=1)     # v cols: identity
    sin_row = jnp.concatenate([
        jnp.tile(sin, (1, NUM_HEADS)) * scale,
        jnp.tile(sin, (1, NUM_KV_HEADS)),
        jnp.zeros((SEQ, KV_WIDTH), jnp.float32)], axis=1)
    tab = jnp.concatenate([cos_row, sin_row], axis=1)        # [SEQ, 128], not batch-tiled

    # wo is PyTorch [out=H, in=Q_WIDTH]; per-head slab of Wo^T: [Hq, D, H]
    wo_heads = wo.T.reshape(NUM_HEADS, HEAD_DIM, HIDDEN_SIZE)
    return w_big, tab, wo_heads


# --------------------------- plain-JAX reference ---------------------------
def reference_attention(hidden_states, wq, wk, wv, wo):
    B, S, H = hidden_states.shape
    x2d = hidden_states.reshape(B * S, H)
    q = (x2d @ wq.T).reshape(B, S, NUM_HEADS, HEAD_DIM).transpose(0, 2, 1, 3)
    k = (x2d @ wk.T).reshape(B, S, NUM_KV_HEADS, HEAD_DIM).transpose(0, 2, 1, 3)
    v = (x2d @ wv.T).reshape(B, S, NUM_KV_HEADS, HEAD_DIM).transpose(0, 2, 1, 3)

    cos, sin = rotary_tables(S, HEAD_DIM, ROPE_THETA)

    def rope4(x):
        d = x.shape[-1]
        x1, x2 = x[..., : d // 2], x[..., d // 2:]
        rot = jnp.concatenate([-x2, x1], axis=-1)
        return x * cos + rot * sin

    q, k = rope4(q), rope4(k)
    k = jnp.repeat(k, NUM_KV_GROUPS, axis=1)
    v = jnp.repeat(v, NUM_KV_GROUPS, axis=1)

    scale = 1.0 / math.sqrt(HEAD_DIM)
    s = jnp.einsum("bhqd,bhkd->bhqk", q, k) * scale
    mask = jnp.tril(jnp.ones((S, S), dtype=bool))
    s = jnp.where(mask, s, -jnp.inf)
    p = jax.nn.softmax(s, axis=-1)
    o = jnp.einsum("bhqk,bhkd->bhqd", p, v)
    o = o.transpose(0, 2, 1, 3).reshape(B * S, NUM_HEADS * HEAD_DIM)
    return (o @ wo.T).reshape(B, S, H)


# ---------------------------------- main -----------------------------------
if __name__ == "__main__":
    key = jax.random.PRNGKey(0)
    kx, kq, kk, kv, ko = jax.random.split(key, 5)

    hidden_states = jax.random.normal(kx, (BATCH, SEQ, HIDDEN_SIZE), dtype=jnp.float32)

    # PyTorch Linear weight layout: [out_features, in_features], no bias.
    wq = 0.02 * jax.random.normal(kq, (Q_WIDTH, HIDDEN_SIZE), dtype=jnp.float32)
    wk = 0.02 * jax.random.normal(kk, (KV_WIDTH, HIDDEN_SIZE), dtype=jnp.float32)
    wv = 0.02 * jax.random.normal(kv, (KV_WIDTH, HIDDEN_SIZE), dtype=jnp.float32)
    wo = 0.02 * jax.random.normal(ko, (HIDDEN_SIZE, Q_WIDTH), dtype=jnp.float32)

    # One-time host-side precompute (outside jit): fused weights + packed RoPE table.
    w_big, tab, wo_heads = precompute_constants(wq, wk, wv, wo)
    x2d = hidden_states.reshape(BATCH * SEQ, HIDDEN_SIZE)

    out = parallel_llama_attention(x2d, w_big, tab, wo_heads)
    out = jax.block_until_ready(out)

    ref = reference_attention(hidden_states, wq, wk, wv, wo)
    assert out.shape == (BATCH, SEQ, HIDDEN_SIZE)
    # atol slightly relaxed vs 1e-4 to absorb the EUP approx-reciprocal ULPs.
    assert jnp.allclose(out, ref, rtol=1e-4, atol=5e-4), "mismatch vs reference"

    # TODO(synk): dist.scatter weight partitioning (world_size>1) and the
    # past_key_value KV-cache update are host/runtime concerns with no
    # single-kernel equivalent.
    print("KERNEL_OK")
</pallas_src>

<mosaic_0001>
module attributes {stable_mosaic.version = 11 : i64} {
  func.func @_fused_attn_kernel(%arg0: i32, %arg1: memref<8x32xf32, #tpu.memory_space<vmem>>, %arg2: memref<128x32xf32, #tpu.memory_space<vmem>>, %arg3: memref<8x128xf32, #tpu.memory_space<vmem>>, %arg4: memref<4x8x32xf32, #tpu.memory_space<vmem>>, %arg5: memref<8x32xf32, #tpu.memory_space<vmem>>) attributes {dimension_semantics = [#tpu.dimension_semantics<parallel>], iteration_bounds = array<i64: 2>, scalar_prefetch = 0 : i64, scratch_operands = 0 : i64, tpu.core_type = #tpu.core_type<tc>, window_params = [{transform_indices = @transform_0, window_bounds = array<i64: 8, 32>}, {pipeline_mode = #tpu.pipeline_mode<synchronous>, transform_indices = @transform_1, window_bounds = array<i64: 128, 32>}, {pipeline_mode = #tpu.pipeline_mode<synchronous>, transform_indices = @transform_2, window_bounds = array<i64: 8, 128>}, {pipeline_mode = #tpu.pipeline_mode<synchronous>, transform_indices = @transform_3, window_bounds = array<i64: 4, 8, 32>}, {transform_indices = @transform_4, window_bounds = array<i64: 8, 32>}]} {
    %c0 = arith.constant 0 : index
    %c0_0 = arith.constant 0 : index
    %0 = vector.load %arg1[%c0, %c0_0] : memref<8x32xf32, #tpu.memory_space<vmem>>, vector<8x32xf32>
    %c0_1 = arith.constant 0 : index
    %c0_2 = arith.constant 0 : index
    %1 = vector.load %arg2[%c0_1, %c0_2] : memref<128x32xf32, #tpu.memory_space<vmem>>, vector<128x32xf32>
    %cst = arith.constant dense<0.000000e+00> : vector<8x128xf32>
    %2 = tpu.matmul %0, %1, %cst {dimension_numbers = #tpu.dot_dimension_numbers<[1], [1], [0], [0], [0, 0, 1, 0], [], []>} : vector<8x32xf32>, vector<128x32xf32>, vector<8x128xf32> -> vector<8x128xf32>
    %c0_3 = arith.constant 0 : index
    %c0_4 = arith.constant 0 : index
    %3 = vector.load %arg3[%c0_3, %c0_4] : memref<8x128xf32, #tpu.memory_space<vmem>>, vector<8x128xf32>
    %4 = arith.mulf %2, %3 : vector<8x128xf32>
    %5 = vector.extract_strided_slice %4 {offsets = [0, 0], sizes = [8, 64], strides = [1, 1]} : vector<8x128xf32> to vector<8x64xf32>
    %6 = vector.extract_strided_slice %4 {offsets = [0, 64], sizes = [8, 64], strides = [1, 1]} : vector<8x128xf32> to vector<8x64xf32>
    %7 = arith.addf %5, %6 : vector<8x64xf32>
    %8 = vector.extract_strided_slice %7 {offsets = [0, 0], sizes = [8, 32], strides = [1, 1]} : vector<8x64xf32> to vector<8x32xf32>
    %9 = vector.extract_strided_slice %7 {offsets = [0, 32], sizes = [8, 16], strides = [1, 1]} : vector<8x64xf32> to vector<8x16xf32>
    %10 = vector.extract_strided_slice %7 {offsets = [0, 48], sizes = [8, 16], strides = [1, 1]} : vector<8x64xf32> to vector<8x16xf32>
    %11 = tpu.iota {dimensions = array<i32: 0>} : vector<8x8xi32>
    %12 = tpu.iota {dimensions = array<i32: 1>} : vector<8x8xi32>
    %13 = arith.cmpi sle, %12, %11 : vector<8x8xi32>
    %14 = vector.extract_strided_slice %8 {offsets = [0, 0], sizes = [8, 8], strides = [1, 1]} : vector<8x32xf32> to vector<8x8xf32>
    %15 = vector.extract_strided_slice %9 {offsets = [0, 0], sizes = [8, 8], strides = [1, 1]} : vector<8x16xf32> to vector<8x8xf32>
    %16 = vector.extract_strided_slice %10 {offsets = [0, 0], sizes = [8, 8], strides = [1, 1]} : vector<8x16xf32> to vector<8x8xf32>
    %cst_5 = arith.constant dense<0.000000e+00> : vector<8x8xf32>
    %17 = tpu.matmul %14, %15, %cst_5 {dimension_numbers = #tpu.dot_dimension_numbers<[1], [1], [0], [0], [0, 0, 1, 0], [], []>} : vector<8x8xf32>, vector<8x8xf32>, vector<8x8xf32> -> vector<8x8xf32>
    %cst_6 = arith.constant -1.000000e+30 : f32
    %18 = vector.broadcast %cst_6 : f32 to vector<8x8xf32>
    %19 = arith.select %13, %17, %18 : vector<8x8xi1>, vector<8x8xf32>
    %cst_7 = arith.constant dense<0xFF800000> : vector<8xf32>
    %20 = vector.multi_reduction <maximumf>, %19, %cst_7 [1] : vector<8x8xf32> to vector<8xf32>
    %21 = vector.shape_cast %20 : vector<8xf32> to vector<8x1xf32>
    %22 = vector.broadcast %21 : vector<8x1xf32> to vector<8x8xf32>
    %23 = arith.subf %19, %22 : vector<8x8xf32>
    %24 = math.exp %23 : vector<8x8xf32>
    %cst_8 = arith.constant dense<0.000000e+00> : vector<8xf32>
    %25 = vector.multi_reduction <add>, %24, %cst_8 [1] : vector<8x8xf32> to vector<8xf32>
    %26 = vector.shape_cast %25 : vector<8xf32> to vector<8x1xf32>
    %27 = tpu.reciprocal %26 {approx = true} : vector<8x1xf32> -> vector<8x1xf32>
    %28 = vector.broadcast %27 : vector<8x1xf32> to vector<8x8xf32>
    %29 = arith.mulf %24, %28 : vector<8x8xf32>
    %cst_9 = arith.constant dense<0.000000e+00> : vector<8x8xf32>
    %30 = tpu.matmul %29, %16, %cst_9 {dimension_numbers = #tpu.dot_dimension_numbers<[1], [0], [0], [1], [0, 0, 1, 1], [], []>} : vector<8x8xf32>, vector<8x8xf32>, vector<8x8xf32> -> vector<8x8xf32>
    %c0_10 = arith.constant 0 : index
    %c0_11 = arith.constant 0 : index
    %c0_12 = arith.constant 0 : index
    %31 = vector.load %arg4[%c0_10, %c0_11, %c0_12] : memref<4x8x32xf32, #tpu.memory_space<vmem>>, vector<1x8x32xf32>
    %32 = vector.shape_cast %31 : vector<1x8x32xf32> to vector<8x32xf32>
    %cst_13 = arith.constant dense<0.000000e+00> : vector<8x32xf32>
    %33 = tpu.matmul %30, %32, %cst_13 {dimension_numbers = #tpu.dot_dimension_numbers<[1], [0], [0], [1], [0, 0, 1, 1], [], []>} : vector<8x8xf32>, vector<8x32xf32>, vector<8x32xf32> -> vector<8x32xf32>
    %34 = vector.extract_strided_slice %8 {offsets = [0, 8], sizes = [8, 8], strides = [1, 1]} : vector<8x32xf32> to vector<8x8xf32>
    %35 = vector.extract_strided_slice %9 {offsets = [0, 0], sizes = [8, 8], strides = [1, 1]} : vector<8x16xf32> to vector<8x8xf32>
    %36 = vector.extract_strided_slice %10 {offsets = [0, 0], sizes = [8, 8], strides = [1, 1]} : vector<8x16xf32> to vector<8x8xf32>
    %cst_14 = arith.constant dense<0.000000e+00> : vector<8x8xf32>
    %37 = tpu.matmul %34, %35, %cst_14 {dimension_numbers = #tpu.dot_dimension_numbers<[1], [1], [0], [0], [0, 0, 1, 0], [], []>} : vector<8x8xf32>, vector<8x8xf32>, vector<8x8xf32> -> vector<8x8xf32>
    %cst_15 = arith.constant -1.000000e+30 : f32
    %38 = vector.broadcast %cst_15 : f32 to vector<8x8xf32>
    %39 = arith.select %13, %37, %38 : vector<8x8xi1>, vector<8x8xf32>
    %cst_16 = arith.constant dense<0xFF800000> : vector<8xf32>
    %40 = vector.multi_reduction <maximumf>, %39, %cst_16 [1] : vector<8x8xf32> to vector<8xf32>
    %41 = vector.shape_cast %40 : vector<8xf32> to vector<8x1xf32>
    %42 = vector.broadcast %41 : vector<8x1xf32> to vector<8x8xf32>
    %43 = arith.subf %39, %42 : vector<8x8xf32>
    %44 = math.exp %43 : vector<8x8xf32>
    %cst_17 = arith.constant dense<0.000000e+00> : vector<8xf32>
    %45 = vector.multi_reduction <add>, %44, %cst_17 [1] : vector<8x8xf32> to vector<8xf32>
    %46 = vector.shape_cast %45 : vector<8xf32> to vector<8x1xf32>
    %47 = tpu.reciprocal %46 {approx = true} : vector<8x1xf32> -> vector<8x1xf32>
    %48 = vector.broadcast %47 : vector<8x1xf32> to vector<8x8xf32>
    %49 = arith.mulf %44, %48 : vector<8x8xf32>
    %cst_18 = arith.constant dense<0.000000e+00> : vector<8x8xf32>
    %50 = tpu.matmul %49, %36, %cst_18 {dimension_numbers = #tpu.dot_dimension_numbers<[1], [0], [0], [1], [0, 0, 1, 1], [], []>} : vector<8x8xf32>, vector<8x8xf32>, vector<8x8xf32> -> vector<8x8xf32>
    %c1 = arith.constant 1 : index
    %c0_19 = arith.constant 0 : index
    %c0_20 = arith.constant 0 : index
    %51 = vector.load %arg4[%c1, %c0_19, %c0_20] : memref<4x8x32xf32, #tpu.memory_space<vmem>>, vector<1x8x32xf32>
    %52 = vector.shape_cast %51 : vector<1x8x32xf32> to vector<8x32xf32>
    %cst_21 = arith.constant dense<0.000000e+00> : vector<8x32xf32>
    %53 = tpu.matmul %50, %52, %cst_21 {dimension_numbers = #tpu.dot_dimension_numbers<[1], [0], [0], [1], [0, 0, 1, 1], [], []>} : vector<8x8xf32>, vector<8x32xf32>, vector<8x32xf32> -> vector<8x32xf32>
    %54 = arith.addf %33, %53 : vector<8x32xf32>
    %55 = vector.extract_strided_slice %8 {offsets = [0, 16], sizes = [8, 8], strides = [1, 1]} : vector<8x32xf32> to vector<8x8xf32>
    %56 = vector.extract_strided_slice %9 {offsets = [0, 8], sizes = [8, 8], strides = [1, 1]} : vector<8x16xf32> to vector<8x8xf32>
    %57 = vector.extract_strided_slice %10 {offsets = [0, 8], sizes = [8, 8], strides = [1, 1]} : vector<8x16xf32> to vector<8x8xf32>
    %cst_22 = arith.constant dense<0.000000e+00> : vector<8x8xf32>
    %58 = tpu.matmul %55, %56, %cst_22 {dimension_numbers = #tpu.dot_dimension_numbers<[1], [1], [0], [0], [0, 0, 1, 0], [], []>} : vector<8x8xf32>, vector<8x8xf32>, vector<8x8xf32> -> vector<8x8xf32>
    %cst_23 = arith.constant -1.000000e+30 : f32
    %59 = vector.broadcast %cst_23 : f32 to vector<8x8xf32>
    %60 = arith.select %13, %58, %59 : vector<8x8xi1>, vector<8x8xf32>
    %cst_24 = arith.constant dense<0xFF800000> : vector<8xf32>
    %61 = vector.multi_reduction <maximumf>, %60, %cst_24 [1] : vector<8x8xf32> to vector<8xf32>
    %62 = vector.shape_cast %61 : vector<8xf32> to vector<8x1xf32>
    %63 = vector.broadcast %62 : vector<8x1xf32> to vector<8x8xf32>
    %64 = arith.subf %60, %63 : vector<8x8xf32>
    %65 = math.exp %64 : vector<8x8xf32>
    %cst_25 = arith.constant dense<0.000000e+00> : vector<8xf32>
    %66 = vector.multi_reduction <add>, %65, %cst_25 [1] : vector<8x8xf32> to vector<8xf32>
    %67 = vector.shape_cast %66 : vector<8xf32> to vector<8x1xf32>
    %68 = tpu.reciprocal %67 {approx = true} : vector<8x1xf32> -> vector<8x1xf32>
    %69 = vector.broadcast %68 : vector<8x1xf32> to vector<8x8xf32>
    %70 = arith.mulf %65, %69 : vector<8x8xf32>
    %cst_26 = arith.constant dense<0.000000e+00> : vector<8x8xf32>
    %71 = tpu.matmul %70, %57, %cst_26 {dimension_numbers = #tpu.dot_dimension_numbers<[1], [0], [0], [1], [0, 0, 1, 1], [], []>} : vector<8x8xf32>, vector<8x8xf32>, vector<8x8xf32> -> vector<8x8xf32>
    %c2 = arith.constant 2 : index
    %c0_27 = arith.constant 0 : index
    %c0_28 = arith.constant 0 : index
    %72 = vector.load %arg4[%c2, %c0_27, %c0_28] : memref<4x8x32xf32, #tpu.memory_space<vmem>>, vector<1x8x32xf32>
    %73 = vector.shape_cast %72 : vector<1x8x32xf32> to vector<8x32xf32>
    %cst_29 = arith.constant dense<0.000000e+00> : vector<8x32xf32>
    %74 = tpu.matmul %71, %73, %cst_29 {dimension_numbers = #tpu.dot_dimension_numbers<[1], [0], [0], [1], [0, 0, 1, 1], [], []>} : vector<8x8xf32>, vector<8x32xf32>, vector<8x32xf32> -> vector<8x32xf32>
    %75 = arith.addf %54, %74 : vector<8x32xf32>
    %76 = vector.extract_strided_slice %8 {offsets = [0, 24], sizes = [8, 8], strides = [1, 1]} : vector<8x32xf32> to vector<8x8xf32>
    %77 = vector.extract_strided_slice %9 {offsets = [0, 8], sizes = [8, 8], strides = [1, 1]} : vector<8x16xf32> to vector<8x8xf32>
    %78 = vector.extract_strided_slice %10 {offsets = [0, 8], sizes = [8, 8], strides = [1, 1]} : vector<8x16xf32> to vector<8x8xf32>
    %cst_30 = arith.constant dense<0.000000e+00> : vector<8x8xf32>
    %79 = tpu.matmul %76, %77, %cst_30 {dimension_numbers = #tpu.dot_dimension_numbers<[1], [1], [0], [0], [0, 0, 1, 0], [], []>} : vector<8x8xf32>, vector<8x8xf32>, vector<8x8xf32> -> vector<8x8xf32>
    %cst_31 = arith.constant -1.000000e+30 : f32
    %80 = vector.broadcast %cst_31 : f32 to vector<8x8xf32>
    %81 = arith.select %13, %79, %80 : vector<8x8xi1>, vector<8x8xf32>
    %cst_32 = arith.constant dense<0xFF800000> : vector<8xf32>
    %82 = vector.multi_reduction <maximumf>, %81, %cst_32 [1] : vector<8x8xf32> to vector<8xf32>
    %83 = vector.shape_cast %82 : vector<8xf32> to vector<8x1xf32>
    %84 = vector.broadcast %83 : vector<8x1xf32> to vector<8x8xf32>
    %85 = arith.subf %81, %84 : vector<8x8xf32>
    %86 = math.exp %85 : vector<8x8xf32>
    %cst_33 = arith.constant dense<0.000000e+00> : vector<8xf32>
    %87 = vector.multi_reduction <add>, %86, %cst_33 [1] : vector<8x8xf32> to vector<8xf32>
    %88 = vector.shape_cast %87 : vector<8xf32> to vector<8x1xf32>
    %89 = tpu.reciprocal %88 {approx = true} : vector<8x1xf32> -> vector<8x1xf32>
    %90 = vector.broadcast %89 : vector<8x1xf32> to vector<8x8xf32>
    %91 = arith.mulf %86, %90 : vector<8x8xf32>
    %cst_34 = arith.constant dense<0.000000e+00> : vector<8x8xf32>
    %92 = tpu.matmul %91, %78, %cst_34 {dimension_numbers = #tpu.dot_dimension_numbers<[1], [0], [0], [1], [0, 0, 1, 1], [], []>} : vector<8x8xf32>, vector<8x8xf32>, vector<8x8xf32> -> vector<8x8xf32>
    %c3 = arith.constant 3 : index
    %c0_35 = arith.constant 0 : index
    %c0_36 = arith.constant 0 : index
    %93 = vector.load %arg4[%c3, %c0_35, %c0_36] : memref<4x8x32xf32, #tpu.memory_space<vmem>>, vector<1x8x32xf32>
    %94 = vector.shape_cast %93 : vector<1x8x32xf32> to vector<8x32xf32>
    %cst_37 = arith.constant dense<0.000000e+00> : vector<8x32xf32>
    %95 = tpu.matmul %92, %94, %cst_37 {dimension_numbers = #tpu.dot_dimension_numbers<[1], [0], [0], [1], [0, 0, 1, 1], [], []>} : vector<8x8xf32>, vector<8x32xf32>, vector<8x32xf32> -> vector<8x32xf32>
    %96 = arith.addf %75, %95 : vector<8x32xf32>
    %c0_38 = arith.constant 0 : index
    %c0_39 = arith.constant 0 : index
    %97 = vector.load %arg5[%c0_38, %c0_39] : memref<8x32xf32, #tpu.memory_space<vmem>>, vector<8x32xf32>
    tpu.vector_store %arg5[%c0_38, %c0_39], %96 {strides = array<i32>} : memref<8x32xf32, #tpu.memory_space<vmem>>, vector<8x32xf32>,
    return
  }
  func.func @transform_0(%arg0: i32) -> (i32, i32) {
    %c0_i32 = arith.constant 0 : i32
    %c0_i32_0 = arith.constant 0 : i32
    return %arg0, %c0_i32 : i32, i32
  }
  func.func @transform_1(%arg0: i32) -> (i32, i32) {
    %c0_i32 = arith.constant 0 : i32
    %c0_i32_0 = arith.constant 0 : i32
    %c0_i32_1 = arith.constant 0 : i32
    return %c0_i32, %c0_i32_0 : i32, i32
  }
  func.func @transform_2(%arg0: i32) -> (i32, i32) {
    %c0_i32 = arith.constant 0 : i32
    %c0_i32_0 = arith.constant 0 : i32
    %c0_i32_1 = arith.constant 0 : i32
    return %c0_i32, %c0_i32_0 : i32, i32
  }
  func.func @transform_3(%arg0: i32) -> (i32, i32, i32) {
    %c0_i32 = arith.constant 0 : i32
    %c0_i32_0 = arith.constant 0 : i32
    %c0_i32_1 = arith.constant 0 : i32
    %c0_i32_2 = arith.constant 0 : i32
    return %c0_i32, %c0_i32_0, %c0_i32_1 : i32, i32, i32
  }
  func.func @transform_4(%arg0: i32) -> (i32, i32) {
    %c0_i32 = arith.constant 0 : i32
    %c0_i32_0 = arith.constant 0 : i32
    return %arg0, %c0_i32 : i32, i32
  }
}

</mosaic_0001>

<llo_original>
// kernel: parallel_llama_attention.1
$region0: #{parallel_llama_attention.1}
  #allocation0 [shape = 'u32[]', space=smem, size = 0x4, offset = 0x4, fixed_abs, tag = 'smem constant byte address 0x4 - core index']
  #allocation1 [shape = 'u32[144,128]{1,0:T(1,128)}', space=vmem, size = 0x12000, scoped, tag = 'internal scratch']
  %s0 = inlined_call_operand.vmem [shape: f32[16,32], index: 0, kind: input, shape index: {}]
  %s1 = inlined_call_operand.vmem [shape: f32[128,32], index: 1, kind: input, shape index: {}]
  %s2 = inlined_call_operand.vmem [shape: f32[8,128], index: 2, kind: input, shape index: {}]
  %s3 = inlined_call_operand.vmem [shape: f32[4,8,32], index: 3, kind: input, shape index: {}]
  %s4 = inlined_call_operand.hbm [shape: f32[16,32], index: 4, kind: output, shape index: {}]
  %s5 = sld [smem:[#allocation0]]
  $region49: #{parallel_llama_attention.1} parent=0
    _
  %s7 = ssub.s32 1, %s5
  %s8 = scalar_select 0, %s7, %s5
  $region1: #{parallel_llama_attention.1} parent=0
    #allocation2 [shape = 'u8[8192]{0}', space=vmem, size = 0x2000, scoped, tag = 'output window, operand 0']
    #allocation3 [shape = 's32[2]{0}', space=sflag, size = 0x8, scoped, tag = 'scoped memory for parallel_llama_attention.1']
    %9 = vsyncpa [#allocation3], 0
    %s10 = scalar_lea.sflag [#allocation3], 1
    %11 = vsyncpa %s10, 0
    loop: start=0, step=1, limit=4
    $region2: #{parallel_llama_attention.1} parent=1 // loop_pre_header
      _
    $region3: #{parallel_llama_attention.1} parent=1 // loop_header
      %s13 = sphi 0, %s17
      %p14 = scmp.ge.s32.totalorder %s13, 4
      %s23 = sphi 0, %s25
      %s26 = sphi 0, %s23
      %s27 = sphi 0, %s26
      %s43 = sphi 0, %s27
      %s47 = sphi 0, %s47
      %s49 = sphi 0, %s47
      %s50 = sphi 0, %s49
      %s64 = sphi 0, %s50
      %s68 = sphi 0, %s68
      %s70 = sphi 0, %s68
      %s71 = sphi 0, %s70
      %s85 = sphi 0, %s71
      %s89 = sphi 0, %s89
      %s91 = sphi 0, %s89
      %s92 = sphi 0, %s91
      %s106 = sphi 0, %s92
      %s112 = sphi 0, %s114
      %s115 = sphi 0, %s112
      %s116 = sphi 0, %s115
      %s132 = sphi 0, %s116
    $region4: #{parallel_llama_attention.1} parent=1 // loop_header_branch
      %16 = sbr.rel (%p14) target = $region8
    $region5: #{parallel_llama_attention.1} parent=1 // loop_body
      %s18 = ssub.s32 %s13, 1
      %s19 = ssub.s32 %s13, 2
      %s20 = sadd.s32 %s13, 1
      %s21 = ssub.s32 %s13, %s20
      %p22 = scmp.eq.s32.totalorder %s21, 0
      %s24 = sadd.s32 %s23, 1
      %s25 = scalar_select %p22, %s23, %s24
      %p28 = pneg %p22
      %p29 = scmp.eq.s32.totalorder %s13, 1
      %p30 = por %p28, %p29
      %p31 = scmp.ne.s32.totalorder %s23, %s26
      %p32 = scmp.eq.s32.totalorder %s13, 0
      %p33 = por %p31, %p32
      %p34 = scmp.ne.s32.totalorder %s23, %s26
      %p35 = scmp.eq.s32.totalorder %s18, 1
      %p36 = por %p34, %p35
      %p37 = scmp.ne.s32.totalorder %s26, %s27
      %p38 = scmp.eq.s32.totalorder %s18, 0
      %p39 = por %p37, %p38
      %p40 = scmp.ne.s32.totalorder %s26, %s27
      %p41 = scmp.eq.s32.totalorder %s19, 1
      %p42 = por %p40, %p41
      %p44 = scmp.ne.s32.totalorder %s27, %s43
      %p45 = scmp.eq.s32.totalorder %s19, 0
      %p46 = por %p44, %p45
      %s48 = sadd.s32 %s47, 1
      %p51 = scmp.eq.s32.totalorder %s13, 1
      %p52 = scmp.ne.s32.totalorder %s47, %s49
      %p53 = scmp.eq.s32.totalorder %s13, 0
      %p54 = por %p52, %p53
      %p55 = scmp.ne.s32.totalorder %s47, %s49
      %p56 = scmp.eq.s32.totalorder %s18, 1
      %p57 = por %p55, %p56
      %p58 = scmp.ne.s32.totalorder %s49, %s50
      %p59 = scmp.eq.s32.totalorder %s18, 0
      %p60 = por %p58, %p59
      %p61 = scmp.ne.s32.totalorder %s49, %s50
      %p62 = scmp.eq.s32.totalorder %s19, 1
      %p63 = por %p61, %p62
      %p65 = scmp.ne.s32.totalorder %s50, %s64
      %p66 = scmp.eq.s32.totalorder %s19, 0
      %p67 = por %p65, %p66
      %s69 = sadd.s32 %s68, 1
      %p72 = scmp.eq.s32.totalorder %s13, 1
      %p73 = scmp.ne.s32.totalorder %s68, %s70
      %p74 = scmp.eq.s32.totalorder %s13, 0
      %p75 = por %p73, %p74
      %p76 = scmp.ne.s32.totalorder %s68, %s70
      %p77 = scmp.eq.s32.totalorder %s18, 1
      %p78 = por %p76, %p77
      %p79 = scmp.ne.s32.totalorder %s70, %s71
      %p80 = scmp.eq.s32.totalorder %s18, 0
      %p81 = por %p79, %p80
      %p82 = scmp.ne.s32.totalorder %s70, %s71
      %p83 = scmp.eq.s32.totalorder %s19, 1
      %p84 = por %p82, %p83
      %p86 = scmp.ne.s32.totalorder %s71, %s85
      %p87 = scmp.eq.s32.totalorder %s19, 0
      %p88 = por %p86, %p87
      %s90 = sadd.s32 %s89, 1
      %p93 = scmp.eq.s32.totalorder %s13, 1
      %p94 = scmp.ne.s32.totalorder %s89, %s91
      %p95 = scmp.eq.s32.totalorder %s13, 0
      %p96 = por %p94, %p95
      %p97 = scmp.ne.s32.totalorder %s89, %s91
      %p98 = scmp.eq.s32.totalorder %s18, 1
      %p99 = por %p97, %p98
      %p100 = scmp.ne.s32.totalorder %s91, %s92
      %p101 = scmp.eq.s32.totalorder %s18, 0
      %p102 = por %p100, %p101
      %p103 = scmp.ne.s32.totalorder %s91, %s92
      %p104 = scmp.eq.s32.totalorder %s19, 1
      %p105 = por %p103, %p104
      %p107 = scmp.ne.s32.totalorder %s92, %s106
      %p108 = scmp.eq.s32.totalorder %s19, 0
      %p109 = por %p107, %p108
      %s110 = ssub.s32 %s13, %s20
      %p111 = scmp.eq.s32.totalorder %s110, 0
      %s113 = sadd.s32 %s112, 1
      %s114 = scalar_select %p111, %s112, %s113
      %p117 = pneg %p111
      %p118 = scmp.eq.s32.totalorder %s13, 1
      %p119 = por %p117, %p118
      %p120 = scmp.ne.s32.totalorder %s112, %s115
      %p121 = scmp.eq.s32.totalorder %s13, 0
      %p122 = por %p120, %p121
      %p123 = scmp.ne.s32.totalorder %s112, %s115
      %p124 = scmp.eq.s32.totalorder %s18, 1
      %p125 = por %p123, %p124
      %p126 = scmp.ne.s32.totalorder %s115, %s116
      %p127 = scmp.eq.s32.totalorder %s18, 0
      %p128 = por %p126, %p127
      %p129 = scmp.ne.s32.totalorder %s115, %s116
      %p130 = scmp.eq.s32.totalorder %s19, 1
      %p131 = por %p129, %p130
      %p133 = scmp.ne.s32.totalorder %s116, %s132
      %p134 = scmp.eq.s32.totalorder %s19, 0
      %p135 = por %p133, %p134
      %p136 = scmp.le.s32.totalorder 1, %s13
      %p137 = scmp.lt.s32.totalorder %s13, 3
      %p138 = pnand %p136, %p137
      %p139 = pneg %p138
      // Predicated region
      $region9: #{parallel_llama_attention.1} parent=5 // pred_check
        _
      $region10: #{parallel_llama_attention.1} parent=5 // pred_check_branch
        %141 = sbr.rel (%p138) target = $region12
      $region11: #{parallel_llama_attention.1} parent=5 // pred_region
        %s142 = ssub.s32 %s13, 1
        // Predicated region
        $region13: #{parallel_llama_attention.1} parent=11 // pred_check
          %p143 = pneg %p60
        $region14: #{parallel_llama_attention.1} parent=11 // pred_check_branch
          %145 = sbr.rel (%p143) target = $region16
        $region15: #{parallel_llama_attention.1} parent=11 // pred_region
          _
        $region16: #{parallel_llama_attention.1} parent=11 // pred_fallthru
          _
        // Predicated region
        $region17: #{parallel_llama_attention.1} parent=11 // pred_check
          %p146 = pneg %p81
        $region18: #{parallel_llama_attention.1} parent=11 // pred_check_branch
          %148 = sbr.rel (%p146) target = $region20
        $region19: #{parallel_llama_attention.1} parent=11 // pred_region
          _
        $region20: #{parallel_llama_attention.1} parent=11 // pred_fallthru
          _
        // Predicated region
        $region21: #{parallel_llama_attention.1} parent=11 // pred_check
          %p149 = pneg %p102
        $region22: #{parallel_llama_attention.1} parent=11 // pred_check_branch
          %151 = sbr.rel (%p149) target = $region24
        $region23: #{parallel_llama_attention.1} parent=11 // pred_region
          _
        $region24: #{parallel_llama_attention.1} parent=11 // pred_fallthru
          _
      $region12: #{parallel_llama_attention.1} parent=5 // pred_fallthru
        _
      %p152 = scmp.lt.s32.totalorder %s13, 2
      // Predicated region
      $region25: #{parallel_llama_attention.1} parent=5 // pred_check
        %p153 = pneg %p152
      $region26: #{parallel_llama_attention.1} parent=5 // pred_check_branch
        %155 = sbr.rel (%p153) target = $region28
      $region27: #{parallel_llama_attention.1} parent=5 // pred_region
        // Predicated region
        $region29: #{parallel_llama_attention.1} parent=27 // pred_check
          %p156 = pneg %p33
        $region30: #{parallel_llama_attention.1} parent=27 // pred_check_branch
          %158 = sbr.rel (%p156) target = $region32
        $region31: #{parallel_llama_attention.1} parent=27 // pred_region
          %p159 = scmp.lt.s32.totalorder %s13, 1
          %s160 = scalar_select %p159, %s13, 1
          %s161 = smul.addr %s160, 8
          %s162 = scalar_lea.vmem %s0, %s161
        $region32: #{parallel_llama_attention.1} parent=27 // pred_fallthru
          _
      $region28: #{parallel_llama_attention.1} parent=5 // pred_fallthru
        _
      %p163 = scmp.le.s32.totalorder 1, %s13
      %p164 = scmp.lt.s32.totalorder %s13, 3
      %p165 = pnand %p163, %p164
      %p166 = pneg %p165
      // Predicated region
      $region33: #{parallel_llama_attention.1} parent=5 // pred_check
        _
      $region34: #{parallel_llama_attention.1} parent=5 // pred_check_branch
        %168 = sbr.rel (%p165) target = $region36
      $region35: #{parallel_llama_attention.1} parent=5 // pred_region
        %s169 = ssub.s32 %s13, 1
        %p170 = scmp.lt.s32.totalorder %s18, 1
        %s171 = scalar_select %p170, %s18, 1
        %s172 = smul.addr %s171, 8
        %s173 = scalar_lea.vmem %s0, %s172
        %p174 = pneg %p39
        %p175 = pneg %p36
        %p176 = pneg %p60
        %p177 = pneg %p57
        %p178 = pneg %p81
        %p179 = pneg %p78
        %p180 = pneg %p102
        %p181 = pneg %p99
        %p182 = pneg %p128
        %p183 = pneg %p125
        %s184 = sand.u32 %s115, 1
        %s185 = scalar_lea.sflag [#allocation3], %s184
        %s186 = sand.u32 %s115, 1
        %s187 = smul.addr %s186, 8
        %s188 = scalar_lea.vmem [#allocation2], %s187
        %p189 = scmp.lt.s32.totalorder %s18, 1
        %s190 = scalar_select %p189, %s18, 1
        %s191 = smul.addr %s190, 8
        %s192 = scalar_lea.vmem %s0, %s191
        %v193 = vld [vmem:[%s192] sm:$0xff]
        %v194 = vld [vmem:[%s1] sm:$0xff]
        %v195 = vld [vmem:[%s1 + $0x8] sm:$0xff]
        %v196 = vld [vmem:[%s1 + $0x10] sm:$0xff]
        %v197 = vld [vmem:[%s1 + $0x18] sm:$0xff]
        %v198 = vld [vmem:[%s1 + $0x20] sm:$0xff]
        %v199 = vld [vmem:[%s1 + $0x28] sm:$0xff]
        %v200 = vld [vmem:[%s1 + $0x30] sm:$0xff]
        %v201 = vld [vmem:[%s1 + $0x38] sm:$0xff]
        %v202 = vld [vmem:[%s1 + $0x40] sm:$0xff]
        %v203 = vld [vmem:[%s1 + $0x48] sm:$0xff]
        %v204 = vld [vmem:[%s1 + $0x50] sm:$0xff]
        %v205 = vld [vmem:[%s1 + $0x58] sm:$0xff]
        %v206 = vld [vmem:[%s1 + $0x60] sm:$0xff]
        %v207 = vld [vmem:[%s1 + $0x68] sm:$0xff]
        %v208 = vld [vmem:[%s1 + $0x70] sm:$0xff]
        %v209 = vld [vmem:[%s1 + $0x78] sm:$0xff]
        %vm210 = vcmask 261120
        %v212 = vsel %vm210, %v193, 0
        %v215 = vsel %vm210, %v194, 0
        %v218 = vsel %vm210, %v195, 0
        %v221 = vsel %vm210, %v196, 0
        %v224 = vsel %vm210, %v197, 0
        %v227 = vsel %vm210, %v198, 0
        %v230 = vsel %vm210, %v199, 0
        %v233 = vsel %vm210, %v200, 0
        %v236 = vsel %vm210, %v201, 0
        %v239 = vsel %vm210, %v202, 0
        %v242 = vsel %vm210, %v203, 0
        %v245 = vsel %vm210, %v204, 0
        %v248 = vsel %vm210, %v205, 0
        %v251 = vsel %vm210, %v206, 0
        %v254 = vsel %vm210, %v207, 0
        %v257 = vsel %vm210, %v208, 0
        %v260 = vsel %vm210, %v209, 0
        %262 = vmatprep.subr.mxu0 0.0
        %263 = vmatpush1.xpose.msra.mxu0 %v260
        %264 = vmatprep.subr.mxu0 0.0
        %265 = vmatpush1.xpose.msra.mxu0 %v257
        %266 = vmatprep.subr.mxu0 0.0
        %267 = vmatpush1.xpose.msra.mxu0 %v254
        %268 = vmatprep.subr.mxu0 0.0
        %269 = vmatpush1.xpose.msra.mxu0 %v251
        %270 = vmatprep.subr.mxu0 0.0
        %271 = vmatpush1.xpose.msra.mxu0 %v248
        %272 = vmatprep.subr.mxu0 0.0
        %273 = vmatpush1.xpose.msra.mxu0 %v245
        %274 = vmatprep.subr.mxu0 0.0
        %275 = vmatpush1.xpose.msra.mxu0 %v242
        %276 = vmatprep.subr.mxu0 0.0
        %277 = vmatpush1.xpose.msra.mxu0 %v239
        %278 = vmatprep.subr.mxu0 0.0
        %279 = vmatpush1.xpose.msra.mxu0 %v236
        %280 = vmatprep.subr.mxu0 0.0
        %281 = vmatpush1.xpose.msra.mxu0 %v233
        %282 = vmatprep.subr.mxu0 0.0
        %283 = vmatpush1.xpose.msra.mxu0 %v230
        %284 = vmatprep.subr.mxu0 0.0
        %285 = vmatpush1.xpose.msra.mxu0 %v227
        %286 = vmatprep.subr.mxu0 0.0
        %287 = vmatpush1.xpose.msra.mxu0 %v224
        %288 = vmatprep.subr.mxu0 0.0
        %289 = vmatpush1.xpose.msra.mxu0 %v221
        %290 = vmatprep.subr.mxu0 0.0
        %291 = vmatpush1.xpose.msra.mxu0 %v218
        %292 = vmatprep.subr.mxu0 0.0
        %293 = vmatpush1.xpose.msra.mxu0 %v215
        %294 = vmatprep.subr.mxu0 0.0
        %295 = vmatpush2.xpose.msra.mxu0 0.0
        %296 = vmatprep.subr.mxu0 0.0
        %297 = vmatpush2.xpose.msra.mxu0 0.0
        %298 = vmatprep.subr.mxu0 0.0
        %299 = vmatpush2.xpose.msra.mxu0 0.0
        %300 = vmatprep.subr.mxu0 0.0
        %301 = vmatpush2.xpose.msra.mxu0 0.0
        %302 = vmatprep.subr.mxu0 0.0
        %303 = vmatpush2.xpose.msra.mxu0 0.0
        %304 = vmatprep.subr.mxu0 0.0
        %305 = vmatpush2.xpose.msra.mxu0 0.0
        %306 = vmatprep.subr.mxu0 0.0
        %307 = vmatpush2.xpose.msra.mxu0 0.0
        %308 = vmatprep.subr.mxu0 0.0
        %309 = vmatpush2.xpose.msra.mxu0 0.0
        %310 = vmatprep.subr.mxu0 0.0
        %311 = vmatpush2.xpose.msra.mxu0 0.0
        %312 = vmatprep.subr.mxu0 0.0
        %313 = vmatpush2.xpose.msra.mxu0 0.0
        %314 = vmatprep.subr.mxu0 0.0
        %315 = vmatpush2.xpose.msra.mxu0 0.0
        %316 = vmatprep.subr.mxu0 0.0
        %317 = vmatpush2.xpose.msra.mxu0 0.0
        %318 = vmatprep.subr.mxu0 0.0
        %319 = vmatpush2.xpose.msra.mxu0 0.0
        %320 = vmatprep.subr.mxu0 0.0
        %321 = vmatpush2.xpose.msra.mxu0 0.0
        %322 = vmatprep.subr.mxu0 0.0
        %323 = vmatpush2.xpose.msra.mxu0 0.0
        %324 = vmatprep.subr.mxu0 0.0
        %325 = vmatpush2.xpose.msra.mxu0 0.0
        %326 = vmatprep.mubr.f32.mxu0 0.0
        %327 = vmatmul.mubr.f32.gmra.mxu0 %v212
        %v328 = vpop.f32.mrf.mxu0
        %v329 = vadd.f32 0.0, %v328
        %v330 = vpop.f32.mrf.mxu0
        %331 = vdwg.mxu0
        %v332 = vld [vmem:[%s2] sm:$0xff]
        %v333 = vmul.f32 %v329, %v332
        %335 = vrot.lane.b32.xlu0 %v333, 64
        %v336 = vpop.permute.xlu0 %335
        %v338 = vadd.f32 %v333, %v336
        %v339 = vlaneseq
        %v340 = vshrl.u32 %v339, 7
        %v341 = vlaneseq
        %v342 = vand.u32 %v341, 127
        %vm343 = vcmp.le.s32.totalorder %v342, %v340
        %345 = vrot.lane.b32.xlu0 %v338, 96
        %v346 = vpop.permute.xlu0 %345
        %vm347 = vcmask 64512
        %v348 = vsel %vm347, %v338, 0
        %v350 = vsel %vm347, %v346, 0
        %352 = vmatprep.subr.mxu0 0.0
        %353 = vmatpush1.xpose.msra.mxu0 0.0
        %354 = vmatprep.subr.mxu0 0.0
        %355 = vmatpush1.xpose.msra.mxu0 0.0
        %356 = vmatprep.subr.mxu0 0.0
        %357 = vmatpush1.xpose.msra.mxu0 0.0
        %358 = vmatprep.subr.mxu0 0.0
        %359 = vmatpush1.xpose.msra.mxu0 0.0
        %360 = vmatprep.subr.mxu0 0.0
        %361 = vmatpush1.xpose.msra.mxu0 0.0
        %362 = vmatprep.subr.mxu0 0.0
        %363 = vmatpush1.xpose.msra.mxu0 0.0
        %364 = vmatprep.subr.mxu0 0.0
        %365 = vmatpush1.xpose.msra.mxu0 0.0
        %366 = vmatprep.subr.mxu0 0.0
        %367 = vmatpush1.xpose.msra.mxu0 0.0
        %368 = vmatprep.subr.mxu0 0.0
        %369 = vmatpush1.xpose.msra.mxu0 0.0
        %370 = vmatprep.subr.mxu0 0.0
        %371 = vmatpush1.xpose.msra.mxu0 0.0
        %372 = vmatprep.subr.mxu0 0.0
        %373 = vmatpush1.xpose.msra.mxu0 0.0
        %374 = vmatprep.subr.mxu0 0.0
        %375 = vmatpush1.xpose.msra.mxu0 0.0
        %376 = vmatprep.subr.mxu0 0.0
        %377 = vmatpush1.xpose.msra.mxu0 0.0
        %378 = vmatprep.subr.mxu0 0.0
        %379 = vmatpush1.xpose.msra.mxu0 0.0
        %380 = vmatprep.subr.mxu0 0.0
        %381 = vmatpush1.xpose.msra.mxu0 0.0
        %382 = vmatprep.subr.mxu0 0.0
        %383 = vmatpush1.xpose.msra.mxu0 %v350
        %384 = vmatprep.subr.mxu0 0.0
        %385 = vmatpush2.xpose.msra.mxu0 0.0
        %386 = vmatprep.subr.mxu0 0.0
        %387 = vmatpush2.xpose.msra.mxu0 0.0
        %388 = vmatprep.subr.mxu0 0.0
        %389 = vmatpush2.xpose.msra.mxu0 0.0
        %390 = vmatprep.subr.mxu0 0.0
        %391 = vmatpush2.xpose.msra.mxu0 0.0
        %392 = vmatprep.subr.mxu0 0.0
        %393 = vmatpush2.xpose.msra.mxu0 0.0
        %394 = vmatprep.subr.mxu0 0.0
        %395 = vmatpush2.xpose.msra.mxu0 0.0
        %396 = vmatprep.subr.mxu0 0.0
        %397 = vmatpush2.xpose.msra.mxu0 0.0
        %398 = vmatprep.subr.mxu0 0.0
        %399 = vmatpush2.xpose.msra.mxu0 0.0
        %400 = vmatprep.subr.mxu0 0.0
        %401 = vmatpush2.xpose.msra.mxu0 0.0
        %402 = vmatprep.subr.mxu0 0.0
        %403 = vmatpush2.xpose.msra.mxu0 0.0
        %404 = vmatprep.subr.mxu0 0.0
        %405 = vmatpush2.xpose.msra.mxu0 0.0
        %406 = vmatprep.subr.mxu0 0.0
        %407 = vmatpush2.xpose.msra.mxu0 0.0
        %408 = vmatprep.subr.mxu0 0.0
        %409 = vmatpush2.xpose.msra.mxu0 0.0
        %410 = vmatprep.subr.mxu0 0.0
        %411 = vmatpush2.xpose.msra.mxu0 0.0
        %412 = vmatprep.subr.mxu0 0.0
        %413 = vmatpush2.xpose.msra.mxu0 0.0
        %414 = vmatprep.subr.mxu0 0.0
        %415 = vmatpush2.xpose.msra.mxu0 0.0
        %416 = vmatprep.mubr.f32.mxu0 0.0
        %417 = vmatmul.mubr.f32.gmra.mxu0 %v348
        %v418 = vpop.f32.mrf.mxu0
        %v419 = vadd.f32 0.0, %v418
        %v420 = vpop.f32.mrf.mxu0
        %421 = vdwg.mxu0
        %v422 = vsel %vm343, %v419, -1e+30
        %v423 = vsel %vm347, %v422, -inf
        %424 = vmax.xlane.f32.xlu0 %v423
        %v425 = vpop.xlane.xlu0 %424
        %v426 = vsub.f32 %v422, %v425
        %v427 = vmul.f32 %v426, 1.442695
        %v428 = vpow.pop %v427
        %v429 = vsel %vm347, %v428, 0.0
        %430 = vadd.xlane.f32.xlu0 %v429
        %v431 = vpop.xlane.xlu0 %430
        %v432 = vrcp.pop %v431
        %v433 = vmul.f32 %v428, %v432
        %434 = vrot.lane.b32.xlu0 %v338, 80
        %v435 = vpop.permute.xlu0 %434
        %v438 = vsel %vm347, %v433, 0
        %440 = vmatprep.subr.mxu0 0.0
        %441 = vmatpush1.msra.mxu0 0.0
        %442 = vmatprep.subr.mxu0 0.0
        %443 = vmatpush1.msra.mxu0 0.0
        %444 = vmatprep.subr.mxu0 0.0
        %445 = vmatpush1.msra.mxu0 0.0
        %446 = vmatprep.subr.mxu0 0.0
        %447 = vmatpush1.msra.mxu0 0.0
        %448 = vmatprep.subr.mxu0 0.0
        %449 = vmatpush1.msra.mxu0 0.0
        %450 = vmatprep.subr.mxu0 0.0
        %451 = vmatpush1.msra.mxu0 0.0
        %452 = vmatprep.subr.mxu0 0.0
        %453 = vmatpush1.msra.mxu0 0.0
        %454 = vmatprep.subr.mxu0 0.0
        %455 = vmatpush1.msra.mxu0 0.0
        %456 = vmatprep.subr.mxu0 0.0
        %457 = vmatpush1.msra.mxu0 0.0
        %458 = vmatprep.subr.mxu0 0.0
        %459 = vmatpush1.msra.mxu0 0.0
        %460 = vmatprep.subr.mxu0 0.0
        %461 = vmatpush1.msra.mxu0 0.0
        %462 = vmatprep.subr.mxu0 0.0
        %463 = vmatpush1.msra.mxu0 0.0
        %464 = vmatprep.subr.mxu0 0.0
        %465 = vmatpush1.msra.mxu0 0.0
        %466 = vmatprep.subr.mxu0 0.0
        %467 = vmatpush1.msra.mxu0 0.0
        %468 = vmatprep.subr.mxu0 0.0
        %469 = vmatpush1.msra.mxu0 0.0
        %470 = vmatprep.subr.mxu0 0.0
        %471 = vmatpush1.msra.mxu0 %v435
        %472 = vmatprep.subr.mxu0 0.0
        %473 = vmatpush2.msra.mxu0 0.0
        %474 = vmatprep.subr.mxu0 0.0
        %475 = vmatpush2.msra.mxu0 0.0
        %476 = vmatprep.subr.mxu0 0.0
        %477 = vmatpush2.msra.mxu0 0.0
        %478 = vmatprep.subr.mxu0 0.0
        %479 = vmatpush2.msra.mxu0 0.0
        %480 = vmatprep.subr.mxu0 0.0
        %481 = vmatpush2.msra.mxu0 0.0
        %482 = vmatprep.subr.mxu0 0.0
        %483 = vmatpush2.msra.mxu0 0.0
        %484 = vmatprep.subr.mxu0 0.0
        %485 = vmatpush2.msra.mxu0 0.0
        %486 = vmatprep.subr.mxu0 0.0
        %487 = vmatpush2.msra.mxu0 0.0
        %488 = vmatprep.subr.mxu0 0.0
        %489 = vmatpush2.msra.mxu0 0.0
        %490 = vmatprep.subr.mxu0 0.0
        %491 = vmatpush2.msra.mxu0 0.0
        %492 = vmatprep.subr.mxu0 0.0
        %493 = vmatpush2.msra.mxu0 0.0
        %494 = vmatprep.subr.mxu0 0.0
        %495 = vmatpush2.msra.mxu0 0.0
        %496 = vmatprep.subr.mxu0 0.0
        %497 = vmatpush2.msra.mxu0 0.0
        %498 = vmatprep.subr.mxu0 0.0
        %499 = vmatpush2.msra.mxu0 0.0
        %500 = vmatprep.subr.mxu0 0.0
        %501 = vmatpush2.msra.mxu0 0.0
        %502 = vmatprep.subr.mxu0 0.0
        %503 = vmatpush2.msra.mxu0 0.0
        %504 = vmatprep.mubr.f32.mxu0 0.0
        %505 = vmatmul.mubr.f32.gmra.mxu0 %v438
        %v506 = vpop.f32.mrf.mxu0
        %v507 = vadd.f32 0.0, %v506
        %v508 = vpop.f32.mrf.mxu0
        %509 = vdwg.mxu0
        %v510 = vld [vmem:[%s3] sm:$0xff]
        %511 = vrot.lane.b32.xlu0 %v338, 120
        %v512 = vpop.permute.xlu0 %511
        %v513 = vsel %vm347, %v512, 0
        %515 = vmatprep.subr.mxu0 0.0
        %516 = vmatpush1.xpose.msra.mxu0 0.0
        %517 = vmatprep.subr.mxu0 0.0
        %518 = vmatpush1.xpose.msra.mxu0 0.0
        %519 = vmatprep.subr.mxu0 0.0
        %520 = vmatpush1.xpose.msra.mxu0 0.0
        %521 = vmatprep.subr.mxu0 0.0
        %522 = vmatpush1.xpose.msra.mxu0 0.0
        %523 = vmatprep.subr.mxu0 0.0
        %524 = vmatpush1.xpose.msra.mxu0 0.0
        %525 = vmatprep.subr.mxu0 0.0
        %526 = vmatpush1.xpose.msra.mxu0 0.0
        %527 = vmatprep.subr.mxu0 0.0
        %528 = vmatpush1.xpose.msra.mxu0 0.0
        %529 = vmatprep.subr.mxu0 0.0
        %530 = vmatpush1.xpose.msra.mxu0 0.0
        %531 = vmatprep.subr.mxu0 0.0
        %532 = vmatpush1.xpose.msra.mxu0 0.0
        %533 = vmatprep.subr.mxu0 0.0
        %534 = vmatpush1.xpose.msra.mxu0 0.0
        %535 = vmatprep.subr.mxu0 0.0
        %536 = vmatpush1.xpose.msra.mxu0 0.0
        %537 = vmatprep.subr.mxu0 0.0
        %538 = vmatpush1.xpose.msra.mxu0 0.0
        %539 = vmatprep.subr.mxu0 0.0
        %540 = vmatpush1.xpose.msra.mxu0 0.0
        %541 = vmatprep.subr.mxu0 0.0
        %542 = vmatpush1.xpose.msra.mxu0 0.0
        %543 = vmatprep.subr.mxu0 0.0
        %544 = vmatpush1.xpose.msra.mxu0 0.0
        %545 = vmatprep.subr.mxu0 0.0
        %546 = vmatpush1.xpose.msra.mxu0 %v350
        %547 = vmatprep.subr.mxu0 0.0
        %548 = vmatpush2.xpose.msra.mxu0 0.0
        %549 = vmatprep.subr.mxu0 0.0
        %550 = vmatpush2.xpose.msra.mxu0 0.0
        %551 = vmatprep.subr.mxu0 0.0
        %552 = vmatpush2.xpose.msra.mxu0 0.0
        %553 = vmatprep.subr.mxu0 0.0
        %554 = vmatpush2.xpose.msra.mxu0 0.0
        %555 = vmatprep.subr.mxu0 0.0
        %556 = vmatpush2.xpose.msra.mxu0 0.0
        %557 = vmatprep.subr.mxu0 0.0
        %558 = vmatpush2.xpose.msra.mxu0 0.0
        %559 = vmatprep.subr.mxu0 0.0
        %560 = vmatpush2.xpose.msra.mxu0 0.0
        %561 = vmatprep.subr.mxu0 0.0
        %562 = vmatpush2.xpose.msra.mxu0 0.0
        %563 = vmatprep.subr.mxu0 0.0
        %564 = vmatpush2.xpose.msra.mxu0 0.0
        %565 = vmatprep.subr.mxu0 0.0
        %566 = vmatpush2.xpose.msra.mxu0 0.0
        %567 = vmatprep.subr.mxu0 0.0
        %568 = vmatpush2.xpose.msra.mxu0 0.0
        %569 = vmatprep.subr.mxu0 0.0
        %570 = vmatpush2.xpose.msra.mxu0 0.0
        %571 = vmatprep.subr.mxu0 0.0
        %572 = vmatpush2.xpose.msra.mxu0 0.0
        %573 = vmatprep.subr.mxu0 0.0
        %574 = vmatpush2.xpose.msra.mxu0 0.0
        %575 = vmatprep.subr.mxu0 0.0
        %576 = vmatpush2.xpose.msra.mxu0 0.0
        %577 = vmatprep.subr.mxu0 0.0
        %578 = vmatpush2.xpose.msra.mxu0 0.0
        %579 = vmatprep.mubr.f32.mxu0 0.0
        %580 = vmatmul.mubr.f32.gmra.mxu0 %v513
        %v581 = vpop.f32.mrf.mxu0
        %v582 = vadd.f32 0.0, %v581
        %v583 = vpop.f32.mrf.mxu0
        %584 = vdwg.mxu0
        %v585 = vsel %vm343, %v582, -1e+30
        %v586 = vsel %vm347, %v585, -inf
        %587 = vmax.xlane.f32.xlu0 %v586
        %v588 = vpop.xlane.xlu0 %587
        %v589 = vsub.f32 %v585, %v588
        %v590 = vmul.f32 %v589, 1.442695
        %v591 = vpow.pop %v590
        %v592 = vsel %vm347, %v591, 0.0
        %593 = vadd.xlane.f32.xlu0 %v592
        %v594 = vpop.xlane.xlu0 %593
        %v595 = vrcp.pop %v594
        %v596 = vmul.f32 %v591, %v595
        %v598 = vsel %vm347, %v596, 0
        %600 = vmatprep.subr.mxu0 0.0
        %601 = vmatpush1.msra.mxu0 0.0
        %602 = vmatprep.subr.mxu0 0.0
        %603 = vmatpush1.msra.mxu0 0.0
        %604 = vmatprep.subr.mxu0 0.0
        %605 = vmatpush1.msra.mxu0 0.0
        %606 = vmatprep.subr.mxu0 0.0
        %607 = vmatpush1.msra.mxu0 0.0
        %608 = vmatprep.subr.mxu0 0.0
        %609 = vmatpush1.msra.mxu0 0.0
        %610 = vmatprep.subr.mxu0 0.0
        %611 = vmatpush1.msra.mxu0 0.0
        %612 = vmatprep.subr.mxu0 0.0
        %613 = vmatpush1.msra.mxu0 0.0
        %614 = vmatprep.subr.mxu0 0.0
        %615 = vmatpush1.msra.mxu0 0.0
        %616 = vmatprep.subr.mxu0 0.0
        %617 = vmatpush1.msra.mxu0 0.0
        %618 = vmatprep.subr.mxu0 0.0
        %619 = vmatpush1.msra.mxu0 0.0
        %620 = vmatprep.subr.mxu0 0.0
        %621 = vmatpush1.msra.mxu0 0.0
        %622 = vmatprep.subr.mxu0 0.0
        %623 = vmatpush1.msra.mxu0 0.0
        %624 = vmatprep.subr.mxu0 0.0
        %625 = vmatpush1.msra.mxu0 0.0
        %626 = vmatprep.subr.mxu0 0.0
        %627 = vmatpush1.msra.mxu0 0.0
        %628 = vmatprep.subr.mxu0 0.0
        %629 = vmatpush1.msra.mxu0 0.0
        %630 = vmatprep.subr.mxu0 0.0
        %631 = vmatpush1.msra.mxu0 %v435
        %632 = vmatprep.subr.mxu0 0.0
        %633 = vmatpush2.msra.mxu0 0.0
        %634 = vmatprep.subr.mxu0 0.0
        %635 = vmatpush2.msra.mxu0 0.0
        %636 = vmatprep.subr.mxu0 0.0
        %637 = vmatpush2.msra.mxu0 0.0
        %638 = vmatprep.subr.mxu0 0.0
        %639 = vmatpush2.msra.mxu0 0.0
        %640 = vmatprep.subr.mxu0 0.0
        %641 = vmatpush2.msra.mxu0 0.0
        %642 = vmatprep.subr.mxu0 0.0
        %643 = vmatpush2.msra.mxu0 0.0
        %644 = vmatprep.subr.mxu0 0.0
        %645 = vmatpush2.msra.mxu0 0.0
        %646 = vmatprep.subr.mxu0 0.0
        %647 = vmatpush2.msra.mxu0 0.0
        %648 = vmatprep.subr.mxu0 0.0
        %649 = vmatpush2.msra.mxu0 0.0
        %650 = vmatprep.subr.mxu0 0.0
        %651 = vmatpush2.msra.mxu0 0.0
        %652 = vmatprep.subr.mxu0 0.0
        %653 = vmatpush2.msra.mxu0 0.0
        %654 = vmatprep.subr.mxu0 0.0
        %655 = vmatpush2.msra.mxu0 0.0
        %656 = vmatprep.subr.mxu0 0.0
        %657 = vmatpush2.msra.mxu0 0.0
        %658 = vmatprep.subr.mxu0 0.0
        %659 = vmatpush2.msra.mxu0 0.0
        %660 = vmatprep.subr.mxu0 0.0
        %661 = vmatpush2.msra.mxu0 0.0
        %662 = vmatprep.subr.mxu0 0.0
        %663 = vmatpush2.msra.mxu0 0.0
        %664 = vmatprep.mubr.f32.mxu0 0.0
        %665 = vmatmul.mubr.f32.gmra.mxu0 %v598
        %v666 = vpop.f32.mrf.mxu0
        %v667 = vadd.f32 0.0, %v666
        %v668 = vpop.f32.mrf.mxu0
        %669 = vdwg.mxu0
        %s670 = scalar_lea.vmem %s3, 8
        %v671 = vld [vmem:[%s670] sm:$0xff]
        %v673 = vsel %vm347, %v667, 0
        %675 = vmatprep.subr.mxu0 0.0
        %676 = vmatpush1.msra.mxu0 0.0
        %677 = vmatprep.subr.mxu0 0.0
        %678 = vmatpush1.msra.mxu0 0.0
        %679 = vmatprep.subr.mxu0 0.0
        %680 = vmatpush1.msra.mxu0 0.0
        %681 = vmatprep.subr.mxu0 0.0
        %682 = vmatpush1.msra.mxu0 0.0
        %683 = vmatprep.subr.mxu0 0.0
        %684 = vmatpush1.msra.mxu0 0.0
        %685 = vmatprep.subr.mxu0 0.0
        %686 = vmatpush1.msra.mxu0 0.0
        %687 = vmatprep.subr.mxu0 0.0
        %688 = vmatpush1.msra.mxu0 0.0
        %689 = vmatprep.subr.mxu0 0.0
        %690 = vmatpush1.msra.mxu0 0.0
        %691 = vmatprep.subr.mxu0 0.0
        %692 = vmatpush1.msra.mxu0 0.0
        %693 = vmatprep.subr.mxu0 0.0
        %694 = vmatpush1.msra.mxu0 0.0
        %695 = vmatprep.subr.mxu0 0.0
        %696 = vmatpush1.msra.mxu0 0.0
        %697 = vmatprep.subr.mxu0 0.0
        %698 = vmatpush1.msra.mxu0 0.0
        %699 = vmatprep.subr.mxu0 0.0
        %700 = vmatpush1.msra.mxu0 0.0
        %701 = vmatprep.subr.mxu0 0.0
        %702 = vmatpush1.msra.mxu0 0.0
        %703 = vmatprep.subr.mxu0 0.0
        %704 = vmatpush1.msra.mxu0 0.0
        %705 = vmatprep.subr.mxu0 0.0
        %706 = vmatpush1.msra.mxu0 %v671
        %707 = vmatprep.subr.mxu0 0.0
        %708 = vmatpush2.msra.mxu0 0.0
        %709 = vmatprep.subr.mxu0 0.0
        %710 = vmatpush2.msra.mxu0 0.0
        %711 = vmatprep.subr.mxu0 0.0
        %712 = vmatpush2.msra.mxu0 0.0
        %713 = vmatprep.subr.mxu0 0.0
        %714 = vmatpush2.msra.mxu0 0.0
        %715 = vmatprep.subr.mxu0 0.0
        %716 = vmatpush2.msra.mxu0 0.0
        %717 = vmatprep.subr.mxu0 0.0
        %718 = vmatpush2.msra.mxu0 0.0
        %719 = vmatprep.subr.mxu0 0.0
        %720 = vmatpush2.msra.mxu0 0.0
        %721 = vmatprep.subr.mxu0 0.0
        %722 = vmatpush2.msra.mxu0 0.0
        %723 = vmatprep.subr.mxu0 0.0
        %724 = vmatpush2.msra.mxu0 0.0
        %725 = vmatprep.subr.mxu0 0.0
        %726 = vmatpush2.msra.mxu0 0.0
        %727 = vmatprep.subr.mxu0 0.0
        %728 = vmatpush2.msra.mxu0 0.0
        %729 = vmatprep.subr.mxu0 0.0
        %730 = vmatpush2.msra.mxu0 0.0
        %731 = vmatprep.subr.mxu0 0.0
        %732 = vmatpush2.msra.mxu0 0.0
        %733 = vmatprep.subr.mxu0 0.0
        %734 = vmatpush2.msra.mxu0 0.0
        %735 = vmatprep.subr.mxu0 0.0
        %736 = vmatpush2.msra.mxu0 0.0
        %737 = vmatprep.subr.mxu0 0.0
        %738 = vmatpush2.msra.mxu0 0.0
        %739 = vmatprep.mubr.f32.mxu0 0.0
        %740 = vmatmul.mubr.f32.gmra.mxu0 %v673
        %v741 = vpop.f32.mrf.mxu0
        %v742 = vadd.f32 0.0, %v741
        %v743 = vpop.f32.mrf.mxu0
        %744 = vdwg.mxu0
        %v746 = vsel %vm347, %v507, 0
        %748 = vmatprep.subr.mxu0 0.0
        %749 = vmatpush1.msra.mxu0 0.0
        %750 = vmatprep.subr.mxu0 0.0
        %751 = vmatpush1.msra.mxu0 0.0
        %752 = vmatprep.subr.mxu0 0.0
        %753 = vmatpush1.msra.mxu0 0.0
        %754 = vmatprep.subr.mxu0 0.0
        %755 = vmatpush1.msra.mxu0 0.0
        %756 = vmatprep.subr.mxu0 0.0
        %757 = vmatpush1.msra.mxu0 0.0
        %758 = vmatprep.subr.mxu0 0.0
        %759 = vmatpush1.msra.mxu0 0.0
        %760 = vmatprep.subr.mxu0 0.0
        %761 = vmatpush1.msra.mxu0 0.0
        %762 = vmatprep.subr.mxu0 0.0
        %763 = vmatpush1.msra.mxu0 0.0
        %764 = vmatprep.subr.mxu0 0.0
        %765 = vmatpush1.msra.mxu0 0.0
        %766 = vmatprep.subr.mxu0 0.0
        %767 = vmatpush1.msra.mxu0 0.0
        %768 = vmatprep.subr.mxu0 0.0
        %769 = vmatpush1.msra.mxu0 0.0
        %770 = vmatprep.subr.mxu0 0.0
        %771 = vmatpush1.msra.mxu0 0.0
        %772 = vmatprep.subr.mxu0 0.0
        %773 = vmatpush1.msra.mxu0 0.0
        %774 = vmatprep.subr.mxu0 0.0
        %775 = vmatpush1.msra.mxu0 0.0
        %776 = vmatprep.subr.mxu0 0.0
        %777 = vmatpush1.msra.mxu0 0.0
        %778 = vmatprep.subr.mxu0 0.0
        %779 = vmatpush1.msra.mxu0 %v510
        %780 = vmatprep.subr.mxu0 0.0
        %781 = vmatpush2.msra.mxu0 0.0
        %782 = vmatprep.subr.mxu0 0.0
        %783 = vmatpush2.msra.mxu0 0.0
        %784 = vmatprep.subr.mxu0 0.0
        %785 = vmatpush2.msra.mxu0 0.0
        %786 = vmatprep.subr.mxu0 0.0
        %787 = vmatpush2.msra.mxu0 0.0
        %788 = vmatprep.subr.mxu0 0.0
        %789 = vmatpush2.msra.mxu0 0.0
        %790 = vmatprep.subr.mxu0 0.0
        %791 = vmatpush2.msra.mxu0 0.0
        %792 = vmatprep.subr.mxu0 0.0
        %793 = vmatpush2.msra.mxu0 0.0
        %794 = vmatprep.subr.mxu0 0.0
        %795 = vmatpush2.msra.mxu0 0.0
        %796 = vmatprep.subr.mxu0 0.0
        %797 = vmatpush2.msra.mxu0 0.0
        %798 = vmatprep.subr.mxu0 0.0
        %799 = vmatpush2.msra.mxu0 0.0
        %800 = vmatprep.subr.mxu0 0.0
        %801 = vmatpush2.msra.mxu0 0.0
        %802 = vmatprep.subr.mxu0 0.0
        %803 = vmatpush2.msra.mxu0 0.0
        %804 = vmatprep.subr.mxu0 0.0
        %805 = vmatpush2.msra.mxu0 0.0
        %806 = vmatprep.subr.mxu0 0.0
        %807 = vmatpush2.msra.mxu0 0.0
        %808 = vmatprep.subr.mxu0 0.0
        %809 = vmatpush2.msra.mxu0 0.0
        %810 = vmatprep.subr.mxu0 0.0
        %811 = vmatpush2.msra.mxu0 0.0
        %812 = vmatprep.mubr.f32.mxu0 0.0
        %813 = vmatmul.mubr.f32.gmra.mxu0 %v746
        %v814 = vpop.f32.mrf.mxu0
        %v815 = vadd.f32 %v742, %v814
        %v816 = vpop.f32.mrf.mxu0
        %817 = vdwg.mxu0
        %818 = vrot.lane.b32.xlu0 %v338, 112
        %v819 = vpop.permute.xlu0 %818
        %820 = vrot.lane.b32.xlu0 %v338, 88
        %v821 = vpop.permute.xlu0 %820
        %v822 = vsel %vm347, %v819, 0
        %v824 = vsel %vm347, %v821, 0
        %826 = vmatprep.subr.mxu0 0.0
        %827 = vmatpush1.xpose.msra.mxu0 0.0
        %828 = vmatprep.subr.mxu0 0.0
        %829 = vmatpush1.xpose.msra.mxu0 0.0
        %830 = vmatprep.subr.mxu0 0.0
        %831 = vmatpush1.xpose.msra.mxu0 0.0
        %832 = vmatprep.subr.mxu0 0.0
        %833 = vmatpush1.xpose.msra.mxu0 0.0
        %834 = vmatprep.subr.mxu0 0.0
        %835 = vmatpush1.xpose.msra.mxu0 0.0
        %836 = vmatprep.subr.mxu0 0.0
        %837 = vmatpush1.xpose.msra.mxu0 0.0
        %838 = vmatprep.subr.mxu0 0.0
        %839 = vmatpush1.xpose.msra.mxu0 0.0
        %840 = vmatprep.subr.mxu0 0.0
        %841 = vmatpush1.xpose.msra.mxu0 0.0
        %842 = vmatprep.subr.mxu0 0.0
        %843 = vmatpush1.xpose.msra.mxu0 0.0
        %844 = vmatprep.subr.mxu0 0.0
        %845 = vmatpush1.xpose.msra.mxu0 0.0
        %846 = vmatprep.subr.mxu0 0.0
        %847 = vmatpush1.xpose.msra.mxu0 0.0
        %848 = vmatprep.subr.mxu0 0.0
        %849 = vmatpush1.xpose.msra.mxu0 0.0
        %850 = vmatprep.subr.mxu0 0.0
        %851 = vmatpush1.xpose.msra.mxu0 0.0
        %852 = vmatprep.subr.mxu0 0.0
        %853 = vmatpush1.xpose.msra.mxu0 0.0
        %854 = vmatprep.subr.mxu0 0.0
        %855 = vmatpush1.xpose.msra.mxu0 0.0
        %856 = vmatprep.subr.mxu0 0.0
        %857 = vmatpush1.xpose.msra.mxu0 %v824
        %858 = vmatprep.subr.mxu0 0.0
        %859 = vmatpush2.xpose.msra.mxu0 0.0
        %860 = vmatprep.subr.mxu0 0.0
        %861 = vmatpush2.xpose.msra.mxu0 0.0
        %862 = vmatprep.subr.mxu0 0.0
        %863 = vmatpush2.xpose.msra.mxu0 0.0
        %864 = vmatprep.subr.mxu0 0.0
        %865 = vmatpush2.xpose.msra.mxu0 0.0
        %866 = vmatprep.subr.mxu0 0.0
        %867 = vmatpush2.xpose.msra.mxu0 0.0
        %868 = vmatprep.subr.mxu0 0.0
        %869 = vmatpush2.xpose.msra.mxu0 0.0
        %870 = vmatprep.subr.mxu0 0.0
        %871 = vmatpush2.xpose.msra.mxu0 0.0
        %872 = vmatprep.subr.mxu0 0.0
        %873 = vmatpush2.xpose.msra.mxu0 0.0
        %874 = vmatprep.subr.mxu0 0.0
        %875 = vmatpush2.xpose.msra.mxu0 0.0
        %876 = vmatprep.subr.mxu0 0.0
        %877 = vmatpush2.xpose.msra.mxu0 0.0
        %878 = vmatprep.subr.mxu0 0.0
        %879 = vmatpush2.xpose.msra.mxu0 0.0
        %880 = vmatprep.subr.mxu0 0.0
        %881 = vmatpush2.xpose.msra.mxu0 0.0
        %882 = vmatprep.subr.mxu0 0.0
        %883 = vmatpush2.xpose.msra.mxu0 0.0
        %884 = vmatprep.subr.mxu0 0.0
        %885 = vmatpush2.xpose.msra.mxu0 0.0
        %886 = vmatprep.subr.mxu0 0.0
        %887 = vmatpush2.xpose.msra.mxu0 0.0
        %888 = vmatprep.subr.mxu0 0.0
        %889 = vmatpush2.xpose.msra.mxu0 0.0
        %890 = vmatprep.mubr.f32.mxu0 0.0
        %891 = vmatmul.mubr.f32.gmra.mxu0 %v822
        %v892 = vpop.f32.mrf.mxu0
        %v893 = vadd.f32 0.0, %v892
        %v894 = vpop.f32.mrf.mxu0
        %895 = vdwg.mxu0
        %v896 = vsel %vm343, %v893, -1e+30
        %v897 = vsel %vm347, %v896, -inf
        %898 = vmax.xlane.f32.xlu0 %v897
        %v899 = vpop.xlane.xlu0 %898
        %v900 = vsub.f32 %v896, %v899
        %v901 = vmul.f32 %v900, 1.442695
        %v902 = vpow.pop %v901
        %v903 = vsel %vm347, %v902, 0.0
        %904 = vadd.xlane.f32.xlu0 %v903
        %v905 = vpop.xlane.xlu0 %904
        %v906 = vrcp.pop %v905
        %v907 = vmul.f32 %v902, %v906
        %908 = vrot.lane.b32.xlu0 %v338, 72
        %v909 = vpop.permute.xlu0 %908
        %v912 = vsel %vm347, %v907, 0
        %914 = vmatprep.subr.mxu0 0.0
        %915 = vmatpush1.msra.mxu0 0.0
        %916 = vmatprep.subr.mxu0 0.0
        %917 = vmatpush1.msra.mxu0 0.0
        %918 = vmatprep.subr.mxu0 0.0
        %919 = vmatpush1.msra.mxu0 0.0
        %920 = vmatprep.subr.mxu0 0.0
        %921 = vmatpush1.msra.mxu0 0.0
        %922 = vmatprep.subr.mxu0 0.0
        %923 = vmatpush1.msra.mxu0 0.0
        %924 = vmatprep.subr.mxu0 0.0
        %925 = vmatpush1.msra.mxu0 0.0
        %926 = vmatprep.subr.mxu0 0.0
        %927 = vmatpush1.msra.mxu0 0.0
        %928 = vmatprep.subr.mxu0 0.0
        %929 = vmatpush1.msra.mxu0 0.0
        %930 = vmatprep.subr.mxu0 0.0
        %931 = vmatpush1.msra.mxu0 0.0
        %932 = vmatprep.subr.mxu0 0.0
        %933 = vmatpush1.msra.mxu0 0.0
        %934 = vmatprep.subr.mxu0 0.0
        %935 = vmatpush1.msra.mxu0 0.0
        %936 = vmatprep.subr.mxu0 0.0
        %937 = vmatpush1.msra.mxu0 0.0
        %938 = vmatprep.subr.mxu0 0.0
        %939 = vmatpush1.msra.mxu0 0.0
        %940 = vmatprep.subr.mxu0 0.0
        %941 = vmatpush1.msra.mxu0 0.0
        %942 = vmatprep.subr.mxu0 0.0
        %943 = vmatpush1.msra.mxu0 0.0
        %944 = vmatprep.subr.mxu0 0.0
        %945 = vmatpush1.msra.mxu0 %v909
        %946 = vmatprep.subr.mxu0 0.0
        %947 = vmatpush2.msra.mxu0 0.0
        %948 = vmatprep.subr.mxu0 0.0
        %949 = vmatpush2.msra.mxu0 0.0
        %950 = vmatprep.subr.mxu0 0.0
        %951 = vmatpush2.msra.mxu0 0.0
        %952 = vmatprep.subr.mxu0 0.0
        %953 = vmatpush2.msra.mxu0 0.0
        %954 = vmatprep.subr.mxu0 0.0
        %955 = vmatpush2.msra.mxu0 0.0
        %956 = vmatprep.subr.mxu0 0.0
        %957 = vmatpush2.msra.mxu0 0.0
        %958 = vmatprep.subr.mxu0 0.0
        %959 = vmatpush2.msra.mxu0 0.0
        %960 = vmatprep.subr.mxu0 0.0
        %961 = vmatpush2.msra.mxu0 0.0
        %962 = vmatprep.subr.mxu0 0.0
        %963 = vmatpush2.msra.mxu0 0.0
        %964 = vmatprep.subr.mxu0 0.0
        %965 = vmatpush2.msra.mxu0 0.0
        %966 = vmatprep.subr.mxu0 0.0
        %967 = vmatpush2.msra.mxu0 0.0
        %968 = vmatprep.subr.mxu0 0.0
        %969 = vmatpush2.msra.mxu0 0.0
        %970 = vmatprep.subr.mxu0 0.0
        %971 = vmatpush2.msra.mxu0 0.0
        %972 = vmatprep.subr.mxu0 0.0
        %973 = vmatpush2.msra.mxu0 0.0
        %974 = vmatprep.subr.mxu0 0.0
        %975 = vmatpush2.msra.mxu0 0.0
        %976 = vmatprep.subr.mxu0 0.0
        %977 = vmatpush2.msra.mxu0 0.0
        %978 = vmatprep.mubr.f32.mxu0 0.0
        %979 = vmatmul.mubr.f32.gmra.mxu0 %v912
        %v980 = vpop.f32.mrf.mxu0
        %v981 = vadd.f32 0.0, %v980
        %v982 = vpop.f32.mrf.mxu0
        %983 = vdwg.mxu0
        %s984 = scalar_lea.vmem %s3, 16
        %v985 = vld [vmem:[%s984] sm:$0xff]
        %v987 = vsel %vm347, %v981, 0
        %989 = vmatprep.subr.mxu0 0.0
        %990 = vmatpush1.msra.mxu0 0.0
        %991 = vmatprep.subr.mxu0 0.0
        %992 = vmatpush1.msra.mxu0 0.0
        %993 = vmatprep.subr.mxu0 0.0
        %994 = vmatpush1.msra.mxu0 0.0
        %995 = vmatprep.subr.mxu0 0.0
        %996 = vmatpush1.msra.mxu0 0.0
        %997 = vmatprep.subr.mxu0 0.0
        %998 = vmatpush1.msra.mxu0 0.0
        %999 = vmatprep.subr.mxu0 0.0
        %1000 = vmatpush1.msra.mxu0 0.0
        %1001 = vmatprep.subr.mxu0 0.0
        %1002 = vmatpush1.msra.mxu0 0.0
        %1003 = vmatprep.subr.mxu0 0.0
        %1004 = vmatpush1.msra.mxu0 0.0
        %1005 = vmatprep.subr.mxu0 0.0
        %1006 = vmatpush1.msra.mxu0 0.0
        %1007 = vmatprep.subr.mxu0 0.0
        %1008 = vmatpush1.msra.mxu0 0.0
        %1009 = vmatprep.subr.mxu0 0.0
        %1010 = vmatpush1.msra.mxu0 0.0
        %1011 = vmatprep.subr.mxu0 0.0
        %1012 = vmatpush1.msra.mxu0 0.0
        %1013 = vmatprep.subr.mxu0 0.0
        %1014 = vmatpush1.msra.mxu0 0.0
        %1015 = vmatprep.subr.mxu0 0.0
        %1016 = vmatpush1.msra.mxu0 0.0
        %1017 = vmatprep.subr.mxu0 0.0
        %1018 = vmatpush1.msra.mxu0 0.0
        %1019 = vmatprep.subr.mxu0 0.0
        %1020 = vmatpush1.msra.mxu0 %v985
        %1021 = vmatprep.subr.mxu0 0.0
        %1022 = vmatpush2.msra.mxu0 0.0
        %1023 = vmatprep.subr.mxu0 0.0
        %1024 = vmatpush2.msra.mxu0 0.0
        %1025 = vmatprep.subr.mxu0 0.0
        %1026 = vmatpush2.msra.mxu0 0.0
        %1027 = vmatprep.subr.mxu0 0.0
        %1028 = vmatpush2.msra.mxu0 0.0
        %1029 = vmatprep.subr.mxu0 0.0
        %1030 = vmatpush2.msra.mxu0 0.0
        %1031 = vmatprep.subr.mxu0 0.0
        %1032 = vmatpush2.msra.mxu0 0.0
        %1033 = vmatprep.subr.mxu0 0.0
        %1034 = vmatpush2.msra.mxu0 0.0
        %1035 = vmatprep.subr.mxu0 0.0
        %1036 = vmatpush2.msra.mxu0 0.0
        %1037 = vmatprep.subr.mxu0 0.0
        %1038 = vmatpush2.msra.mxu0 0.0
        %1039 = vmatprep.subr.mxu0 0.0
        %1040 = vmatpush2.msra.mxu0 0.0
        %1041 = vmatprep.subr.mxu0 0.0
        %1042 = vmatpush2.msra.mxu0 0.0
        %1043 = vmatprep.subr.mxu0 0.0
        %1044 = vmatpush2.msra.mxu0 0.0
        %1045 = vmatprep.subr.mxu0 0.0
        %1046 = vmatpush2.msra.mxu0 0.0
        %1047 = vmatprep.subr.mxu0 0.0
        %1048 = vmatpush2.msra.mxu0 0.0
        %1049 = vmatprep.subr.mxu0 0.0
        %1050 = vmatpush2.msra.mxu0 0.0
        %1051 = vmatprep.subr.mxu0 0.0
        %1052 = vmatpush2.msra.mxu0 0.0
        %1053 = vmatprep.mubr.f32.mxu0 0.0
        %1054 = vmatmul.mubr.f32.gmra.mxu0 %v987
        %v1055 = vpop.f32.mrf.mxu0
        %v1056 = vadd.f32 0.0, %v1055
        %v1057 = vpop.f32.mrf.mxu0
        %1058 = vdwg.mxu0
        %v1059 = vadd.f32 %v815, %v1056
        %1060 = vrot.lane.b32.xlu0 %v338, 104
        %v1061 = vpop.permute.xlu0 %1060
        %v1062 = vsel %vm347, %v1061, 0
        %1064 = vmatprep.subr.mxu0 0.0
        %1065 = vmatpush1.xpose.msra.mxu0 0.0
        %1066 = vmatprep.subr.mxu0 0.0
        %1067 = vmatpush1.xpose.msra.mxu0 0.0
        %1068 = vmatprep.subr.mxu0 0.0
        %1069 = vmatpush1.xpose.msra.mxu0 0.0
        %1070 = vmatprep.subr.mxu0 0.0
        %1071 = vmatpush1.xpose.msra.mxu0 0.0
        %1072 = vmatprep.subr.mxu0 0.0
        %1073 = vmatpush1.xpose.msra.mxu0 0.0
        %1074 = vmatprep.subr.mxu0 0.0
        %1075 = vmatpush1.xpose.msra.mxu0 0.0
        %1076 = vmatprep.subr.mxu0 0.0
        %1077 = vmatpush1.xpose.msra.mxu0 0.0
        %1078 = vmatprep.subr.mxu0 0.0
        %1079 = vmatpush1.xpose.msra.mxu0 0.0
        %1080 = vmatprep.subr.mxu0 0.0
        %1081 = vmatpush1.xpose.msra.mxu0 0.0
        %1082 = vmatprep.subr.mxu0 0.0
        %1083 = vmatpush1.xpose.msra.mxu0 0.0
        %1084 = vmatprep.subr.mxu0 0.0
        %1085 = vmatpush1.xpose.msra.mxu0 0.0
        %1086 = vmatprep.subr.mxu0 0.0
        %1087 = vmatpush1.xpose.msra.mxu0 0.0
        %1088 = vmatprep.subr.mxu0 0.0
        %1089 = vmatpush1.xpose.msra.mxu0 0.0
        %1090 = vmatprep.subr.mxu0 0.0
        %1091 = vmatpush1.xpose.msra.mxu0 0.0
        %1092 = vmatprep.subr.mxu0 0.0
        %1093 = vmatpush1.xpose.msra.mxu0 0.0
        %1094 = vmatprep.subr.mxu0 0.0
        %1095 = vmatpush1.xpose.msra.mxu0 %v824
        %1096 = vmatprep.subr.mxu0 0.0
        %1097 = vmatpush2.xpose.msra.mxu0 0.0
        %1098 = vmatprep.subr.mxu0 0.0
        %1099 = vmatpush2.xpose.msra.mxu0 0.0
        %1100 = vmatprep.subr.mxu0 0.0
        %1101 = vmatpush2.xpose.msra.mxu0 0.0
        %1102 = vmatprep.subr.mxu0 0.0
        %1103 = vmatpush2.xpose.msra.mxu0 0.0
        %1104 = vmatprep.subr.mxu0 0.0
        %1105 = vmatpush2.xpose.msra.mxu0 0.0
        %1106 = vmatprep.subr.mxu0 0.0
        %1107 = vmatpush2.xpose.msra.mxu0 0.0
        %1108 = vmatprep.subr.mxu0 0.0
        %1109 = vmatpush2.xpose.msra.mxu0 0.0
        %1110 = vmatprep.subr.mxu0 0.0
        %1111 = vmatpush2.xpose.msra.mxu0 0.0
        %1112 = vmatprep.subr.mxu0 0.0
        %1113 = vmatpush2.xpose.msra.mxu0 0.0
        %1114 = vmatprep.subr.mxu0 0.0
        %1115 = vmatpush2.xpose.msra.mxu0 0.0
        %1116 = vmatprep.subr.mxu0 0.0
        %1117 = vmatpush2.xpose.msra.mxu0 0.0
        %1118 = vmatprep.subr.mxu0 0.0
        %1119 = vmatpush2.xpose.msra.mxu0 0.0
        %1120 = vmatprep.subr.mxu0 0.0
        %1121 = vmatpush2.xpose.msra.mxu0 0.0
        %1122 = vmatprep.subr.mxu0 0.0
        %1123 = vmatpush2.xpose.msra.mxu0 0.0
        %1124 = vmatprep.subr.mxu0 0.0
        %1125 = vmatpush2.xpose.msra.mxu0 0.0
        %1126 = vmatprep.subr.mxu0 0.0
        %1127 = vmatpush2.xpose.msra.mxu0 0.0
        %1128 = vmatprep.mubr.f32.mxu0 0.0
        %1129 = vmatmul.mubr.f32.gmra.mxu0 %v1062
        %v1130 = vpop.f32.mrf.mxu0
        %v1131 = vadd.f32 0.0, %v1130
        %v1132 = vpop.f32.mrf.mxu0
        %1133 = vdwg.mxu0
        %v1134 = vsel %vm343, %v1131, -1e+30
        %v1135 = vsel %vm347, %v1134, -inf
        %1136 = vmax.xlane.f32.xlu0 %v1135
        %v1137 = vpop.xlane.xlu0 %1136
        %v1138 = vsub.f32 %v1134, %v1137
        %v1139 = vmul.f32 %v1138, 1.442695
        %v1140 = vpow.pop %v1139
        %v1141 = vsel %vm347, %v1140, 0.0
        %1142 = vadd.xlane.f32.xlu0 %v1141
        %v1143 = vpop.xlane.xlu0 %1142
        %v1144 = vrcp.pop %v1143
        %v1145 = vmul.f32 %v1140, %v1144
        %v1147 = vsel %vm347, %v1145, 0
        %1149 = vmatprep.subr.mxu0 0.0
        %1150 = vmatpush1.msra.mxu0 0.0
        %1151 = vmatprep.subr.mxu0 0.0
        %1152 = vmatpush1.msra.mxu0 0.0
        %1153 = vmatprep.subr.mxu0 0.0
        %1154 = vmatpush1.msra.mxu0 0.0
        %1155 = vmatprep.subr.mxu0 0.0
        %1156 = vmatpush1.msra.mxu0 0.0
        %1157 = vmatprep.subr.mxu0 0.0
        %1158 = vmatpush1.msra.mxu0 0.0
        %1159 = vmatprep.subr.mxu0 0.0
        %1160 = vmatpush1.msra.mxu0 0.0
        %1161 = vmatprep.subr.mxu0 0.0
        %1162 = vmatpush1.msra.mxu0 0.0
        %1163 = vmatprep.subr.mxu0 0.0
        %1164 = vmatpush1.msra.mxu0 0.0
        %1165 = vmatprep.subr.mxu0 0.0
        %1166 = vmatpush1.msra.mxu0 0.0
        %1167 = vmatprep.subr.mxu0 0.0
        %1168 = vmatpush1.msra.mxu0 0.0
        %1169 = vmatprep.subr.mxu0 0.0
        %1170 = vmatpush1.msra.mxu0 0.0
        %1171 = vmatprep.subr.mxu0 0.0
        %1172 = vmatpush1.msra.mxu0 0.0
        %1173 = vmatprep.subr.mxu0 0.0
        %1174 = vmatpush1.msra.mxu0 0.0
        %1175 = vmatprep.subr.mxu0 0.0
        %1176 = vmatpush1.msra.mxu0 0.0
        %1177 = vmatprep.subr.mxu0 0.0
        %1178 = vmatpush1.msra.mxu0 0.0
        %1179 = vmatprep.subr.mxu0 0.0
        %1180 = vmatpush1.msra.mxu0 %v909
        %1181 = vmatprep.subr.mxu0 0.0
        %1182 = vmatpush2.msra.mxu0 0.0
        %1183 = vmatprep.subr.mxu0 0.0
        %1184 = vmatpush2.msra.mxu0 0.0
        %1185 = vmatprep.subr.mxu0 0.0
        %1186 = vmatpush2.msra.mxu0 0.0
        %1187 = vmatprep.subr.mxu0 0.0
        %1188 = vmatpush2.msra.mxu0 0.0
        %1189 = vmatprep.subr.mxu0 0.0
        %1190 = vmatpush2.msra.mxu0 0.0
        %1191 = vmatprep.subr.mxu0 0.0
        %1192 = vmatpush2.msra.mxu0 0.0
        %1193 = vmatprep.subr.mxu0 0.0
        %1194 = vmatpush2.msra.mxu0 0.0
        %1195 = vmatprep.subr.mxu0 0.0
        %1196 = vmatpush2.msra.mxu0 0.0
        %1197 = vmatprep.subr.mxu0 0.0
        %1198 = vmatpush2.msra.mxu0 0.0
        %1199 = vmatprep.subr.mxu0 0.0
        %1200 = vmatpush2.msra.mxu0 0.0
        %1201 = vmatprep.subr.mxu0 0.0
        %1202 = vmatpush2.msra.mxu0 0.0
        %1203 = vmatprep.subr.mxu0 0.0
        %1204 = vmatpush2.msra.mxu0 0.0
        %1205 = vmatprep.subr.mxu0 0.0
        %1206 = vmatpush2.msra.mxu0 0.0
        %1207 = vmatprep.subr.mxu0 0.0
        %1208 = vmatpush2.msra.mxu0 0.0
        %1209 = vmatprep.subr.mxu0 0.0
        %1210 = vmatpush2.msra.mxu0 0.0
        %1211 = vmatprep.subr.mxu0 0.0
        %1212 = vmatpush2.msra.mxu0 0.0
        %1213 = vmatprep.mubr.f32.mxu0 0.0
        %1214 = vmatmul.mubr.f32.gmra.mxu0 %v1147
        %v1215 = vpop.f32.mrf.mxu0
        %v1216 = vadd.f32 0.0, %v1215
        %v1217 = vpop.f32.mrf.mxu0
        %1218 = vdwg.mxu0
        %s1219 = scalar_lea.vmem %s3, 24
        %v1220 = vld [vmem:[%s1219] sm:$0xff]
        %v1222 = vsel %vm347, %v1216, 0
        %1224 = vmatprep.subr.mxu0 0.0
        %1225 = vmatpush1.msra.mxu0 0.0
        %1226 = vmatprep.subr.mxu0 0.0
        %1227 = vmatpush1.msra.mxu0 0.0
        %1228 = vmatprep.subr.mxu0 0.0
        %1229 = vmatpush1.msra.mxu0 0.0
        %1230 = vmatprep.subr.mxu0 0.0
        %1231 = vmatpush1.msra.mxu0 0.0
        %1232 = vmatprep.subr.mxu0 0.0
        %1233 = vmatpush1.msra.mxu0 0.0
        %1234 = vmatprep.subr.mxu0 0.0
        %1235 = vmatpush1.msra.mxu0 0.0
        %1236 = vmatprep.subr.mxu0 0.0
        %1237 = vmatpush1.msra.mxu0 0.0
        %1238 = vmatprep.subr.mxu0 0.0
        %1239 = vmatpush1.msra.mxu0 0.0
        %1240 = vmatprep.subr.mxu0 0.0
        %1241 = vmatpush1.msra.mxu0 0.0
        %1242 = vmatprep.subr.mxu0 0.0
        %1243 = vmatpush1.msra.mxu0 0.0
        %1244 = vmatprep.subr.mxu0 0.0
        %1245 = vmatpush1.msra.mxu0 0.0
        %1246 = vmatprep.subr.mxu0 0.0
        %1247 = vmatpush1.msra.mxu0 0.0
        %1248 = vmatprep.subr.mxu0 0.0
        %1249 = vmatpush1.msra.mxu0 0.0
        %1250 = vmatprep.subr.mxu0 0.0
        %1251 = vmatpush1.msra.mxu0 0.0
        %1252 = vmatprep.subr.mxu0 0.0
        %1253 = vmatpush1.msra.mxu0 0.0
        %1254 = vmatprep.subr.mxu0 0.0
        %1255 = vmatpush1.msra.mxu0 %v1220
        %1256 = vmatprep.subr.mxu0 0.0
        %1257 = vmatpush2.msra.mxu0 0.0
        %1258 = vmatprep.subr.mxu0 0.0
        %1259 = vmatpush2.msra.mxu0 0.0
        %1260 = vmatprep.subr.mxu0 0.0
        %1261 = vmatpush2.msra.mxu0 0.0
        %1262 = vmatprep.subr.mxu0 0.0
        %1263 = vmatpush2.msra.mxu0 0.0
        %1264 = vmatprep.subr.mxu0 0.0
        %1265 = vmatpush2.msra.mxu0 0.0
        %1266 = vmatprep.subr.mxu0 0.0
        %1267 = vmatpush2.msra.mxu0 0.0
        %1268 = vmatprep.subr.mxu0 0.0
        %1269 = vmatpush2.msra.mxu0 0.0
        %1270 = vmatprep.subr.mxu0 0.0
        %1271 = vmatpush2.msra.mxu0 0.0
        %1272 = vmatprep.subr.mxu0 0.0
        %1273 = vmatpush2.msra.mxu0 0.0
        %1274 = vmatprep.subr.mxu0 0.0
        %1275 = vmatpush2.msra.mxu0 0.0
        %1276 = vmatprep.subr.mxu0 0.0
        %1277 = vmatpush2.msra.mxu0 0.0
        %1278 = vmatprep.subr.mxu0 0.0
        %1279 = vmatpush2.msra.mxu0 0.0
        %1280 = vmatprep.subr.mxu0 0.0
        %1281 = vmatpush2.msra.mxu0 0.0
        %1282 = vmatprep.subr.mxu0 0.0
        %1283 = vmatpush2.msra.mxu0 0.0
        %1284 = vmatprep.subr.mxu0 0.0
        %1285 = vmatpush2.msra.mxu0 0.0
        %1286 = vmatprep.subr.mxu0 0.0
        %1287 = vmatpush2.msra.mxu0 0.0
        %1288 = vmatprep.mubr.f32.mxu0 0.0
        %1289 = vmatmul.mubr.f32.gmra.mxu0 %v1222
        %v1290 = vpop.f32.mrf.mxu0
        %v1291 = vadd.f32 0.0, %v1290
        %v1292 = vpop.f32.mrf.mxu0
        %1293 = vdwg.mxu0
        %v1294 = vadd.f32 %v1059, %v1291
        %1295 = vst.msk [vmem:[%s188] sm:$0xff] %vm210, %v1294
        %s1296 = sand.u32 %s115, 1
        %s1297 = scalar_lea.sflag [#allocation3], %s1296
        %s1298 = sand.u32 %s115, 1
        %s1299 = smul.addr %s1298, 8
        %s1300 = scalar_lea.vmem [#allocation2], %s1299
        // Predicated region
        $region37: #{parallel_llama_attention.1} parent=35 // pred_check
          %p1301 = pneg %p125
        $region38: #{parallel_llama_attention.1} parent=35 // pred_check_branch
          %1303 = sbr.rel (%p1301) target = $region40
        $region39: #{parallel_llama_attention.1} parent=35 // pred_region
          %s1305 = ssub.s32 128, 128
          %1306 = vsyncadd %s1297, %s1305
          %s1307 = smul.addr %s18, 128
          %s1308 = scalar_lea.hbm %s4, %s1307
          %s1310 = sshll.u32 %s1300, 4
          %s1311 = int_to_ptr.vmem [resolvable:$true] %s1310
          %1313 = dma.vmem_to_hbm [thread:$0]  %s1311, 128, %s1308, %s1297
        $region40: #{parallel_llama_attention.1} parent=35 // pred_fallthru
          _
      $region36: #{parallel_llama_attention.1} parent=5 // pred_fallthru
        _
      %p1314 = scmp.le.s32.totalorder 2, %s13
      // Predicated region
      $region41: #{parallel_llama_attention.1} parent=5 // pred_check
        %p1315 = pneg %p1314
      $region42: #{parallel_llama_attention.1} parent=5 // pred_check_branch
        %1317 = sbr.rel (%p1315) target = $region44
      $region43: #{parallel_llama_attention.1} parent=5 // pred_region
        %s1318 = ssub.s32 %s13, 2
        // Predicated region
        $region45: #{parallel_llama_attention.1} parent=43 // pred_check
          %p1319 = pneg %p131
        $region46: #{parallel_llama_attention.1} parent=43 // pred_check_branch
          %1321 = sbr.rel (%p1319) target = $region48
        $region47: #{parallel_llama_attention.1} parent=43 // pred_region
          %s1322 = sand.u32 %s116, 1
          %s1323 = scalar_lea.sflag [#allocation3], %s1322
          %s1324 = sand.u32 %s116, 1
          %s1325 = smul.addr %s1324, 8
          %s1326 = scalar_lea.vmem [#allocation2], %s1325
          %1327 = dma.done %s1323, 128
        $region48: #{parallel_llama_attention.1} parent=43 // pred_fallthru
          _
      $region44: #{parallel_llama_attention.1} parent=5 // pred_fallthru
        _
    $region6: #{parallel_llama_attention.1} parent=1 // loop_footer
      %s17 = sadd.s32 1, %s13
    $region7: #{parallel_llama_attention.1} parent=1 // loop_footer_branch
      %12 = sbr.rel target = $region3
    $region8: #{parallel_llama_attention.1} parent=1 // loop_exit
      _
    %1328 = vsyncpa [#allocation3], 1
    %s1329 = scalar_lea.sflag [#allocation3], 1
    %1330 = vsyncpa %s1329, 1

</llo_original>
